<compile_context>
chip_gen: v5e
topology: v5e:2x2
jax: 0.10.0
libtpu: 0.0.40
codegen_flags: <defaults>
</compile_context>

<pallas_src>
import functools
import math

import jax
import jax.numpy as jnp
from jax import lax
from jax.experimental import pallas as pl
from jax.experimental.pallas import tpu as pltpu


_DIRS = ("gru1_fwd", "gru1_bwd", "gru2_fwd", "gru2_bwd")
_GATE_STRIDE = 128   # padded per-gate lane stride (>= 4*H) -> every gate slice is vreg aligned


# ----------------------------- Pallas kernel ---------------------------------
def _make_dsm_kernel(apply_softmax: bool, T: int, B: int, D: int):
    G = _GATE_STRIDE

    def kernel(tok1_ref, tok2_ref,            # SMEM: (B, T) int32 token ids
               emb1_ref, emb2_ref,            # VMEM: (V1, D), (V2, D) f32 embedding tables
               wx_ref,                        # VMEM: (4D, 3G) f32  packed W_ih (all 4 dirs)
               gb_ref,                        # VMEM: (1, 3G) f32   folded gate biases
               whh_ref,                       # VMEM: (G, 3G) bf16  block-diagonal W_hh
               bhn_ref,                       # VMEM: (1, G)  f32   b_hn per direction
               fcw_ref, fcb_ref,              # VMEM: (G, 2), (1, 2) f32
               out_ref,                       # VMEM: (B, 2) f32
               x_ref):                        # VMEM scratch: (T*B, 4D) f32
        # ---------- fused embedding gather (tokens from SMEM, tables in VMEM) ----------
        # X row j = t*B + b is [emb1[tok1[b,t]] | emb1[tok1[b,T-1-t]] |
        #                       emb2[tok2[b,t]] | emb2[tok2[b,T-1-t]]]
        # i.e. the backward-direction columns already carry the time-flipped rows, so all
        # four directions share one time index in the recurrence below.
        for t in range(T):
            for b in range(B):
                i1 = tok1_ref[b, t]
                i2 = tok2_ref[b, t]
                r1 = emb1_ref[pl.ds(i1, 1), :]              # (1, D) dynamic row read
                r2 = emb2_ref[pl.ds(i2, 1), :]              # (1, D)
                jn = t * B + b                              # natural time slot
                jf = (T - 1 - t) * B + b                    # flipped time slot
                x_ref[jn:jn + 1, 0 * D:1 * D] = r1          # -> gru1 forward
                x_ref[jf:jf + 1, 1 * D:2 * D] = r1          # -> gru1 backward
                x_ref[jn:jn + 1, 2 * D:3 * D] = r2          # -> gru2 forward
                x_ref[jf:jf + 1, 3 * D:4 * D] = r2          # -> gru2 backward

        # ---------- hoisted input projections: ONE MXU dot, biases pre-folded ----------
        # proj column layout: [r (4 dirs, padded to 128) | z (...) | n (...)]
        proj = jnp.dot(x_ref[...], wx_ref[...],
                       preferred_element_type=jnp.float32) + gb_ref[...]    # (T*B, 3G)

        whh = whh_ref[...]                 # (G, 3G) bf16, loaded once, reused every step
        bhn = bhn_ref[...]                 # (1, G)

        # ---------- fused 4-direction GRU recurrence (serial over T) ----------
        # h = [h1_fwd | h1_bwd | h2_fwd | h2_bwd | 0-pad] : (B, 128).
        # NOTE: jnp.dot re-stages the constant RHS each step; pltpu.matmul_push_rhs
        # residency was skipped (not worth the complexity at this size).
        h = jnp.zeros((B, G), jnp.float32)
        for t in range(T):                                   # T static -> fully unrolled
            gx = proj[t * B:(t + 1) * B, :]                  # (B, 3G) static slice
            gh = jnp.dot(h.astype(jnp.bfloat16), whh,        # bf16 x bf16 -> f32 acc
                         preferred_element_type=jnp.float32)
            r = jax.nn.sigmoid(gx[:, 0 * G:1 * G] + gh[:, 0 * G:1 * G])
            z = jax.nn.sigmoid(gx[:, 1 * G:2 * G] + gh[:, 1 * G:2 * G])
            n = jnp.tanh(gx[:, 2 * G:3 * G] + r * (gh[:, 2 * G:3 * G] + bhn))
            h = (1.0 - z) * n + z * h                        # PyTorch GRU update rule

        # ---------- FC(4H -> 2); h is already in PyTorch's concat order ----------
        scores = jnp.dot(h, fcw_ref[...],
                         preferred_element_type=jnp.float32) + fcb_ref[...]

        if apply_softmax:
            # Exact 2-class softmax: p_i = sigmoid(s_i - s_other); 2*s_i - (s0+s1) = s_i - s_other.
            s_sum = jnp.sum(scores, axis=1, keepdims=True)
            scores = jax.nn.sigmoid(2.0 * scores - s_sum)

        out_ref[...] = scores.astype(out_ref.dtype)

    return kernel


# ------------------------ one-time parameter packing --------------------------
def prepare_params(params):
    """Pack model params into the kernel layout.  Runs ONCE (hoisted out of the
    per-call jitted forward); everything below depends only on the weights."""
    D = params["emb1"].shape[1]
    H = params["gru1_fwd_whh"].shape[-1]
    G = _GATE_STRIDE
    assert 4 * H <= G

    wx = jnp.zeros((4 * D, 3 * G), jnp.float32)    # input projections, all 4 directions
    gb = jnp.zeros((1, 3 * G), jnp.float32)        # b_ih + b_hh folded for r/z, b_ih for n
    whh = jnp.zeros((G, 3 * G), jnp.float32)       # block-diagonal hidden weights (0-padded)
    bhn = jnp.zeros((1, G), jnp.float32)           # b_hn (kept separate: inside r*(Wh+b))

    for d, name in enumerate(_DIRS):
        wih_d = params[name + "_wih"]   # (3, D, H), gate order [r, z, n], oriented for x @ W
        whh_d = params[name + "_whh"]   # (3, H, H), oriented for h @ W
        bih_d = params[name + "_bih"]   # (3, 1, H)
        bhh_d = params[name + "_bhh"]   # (3, 1, H)
        for g in range(3):
            c0 = g * G + d * H
            wx = wx.at[d * D:(d + 1) * D, c0:c0 + H].set(wih_d[g])
            whh = whh.at[d * H:(d + 1) * H, c0:c0 + H].set(whh_d[g])
            bias = bih_d[g] + bhh_d[g] if g < 2 else bih_d[g]
            gb = gb.at[0:1, c0:c0 + H].set(bias)
        bhn = bhn.at[0:1, d * H:(d + 1) * H].set(bhh_d[2])

    fcw = jnp.zeros((G, 2), jnp.float32).at[:4 * H, :].set(params["fc_w"])

    return {
        "emb1": params["emb1"].astype(jnp.float32),
        "emb2": params["emb2"].astype(jnp.float32),
        "wx": wx,
        "gb": gb,
        "whh": whh.astype(jnp.bfloat16),   # bf16 RHS for the latency-bound recurrent dot
        "bhn": bhn,
        "fcw": fcw,
        "fcb": params["fc_b"].astype(jnp.float32),
    }


# ------------------------------- forward --------------------------------------
@functools.partial(jax.jit, static_argnames=("apply_softmax",))
def text_dsm_forward(packed, tokens1, tokens2, apply_softmax=False):
    B, T = tokens1.shape
    D = packed["emb1"].shape[1]

    kernel = _make_dsm_kernel(apply_softmax, T=T, B=B, D=D)
    smem = pl.BlockSpec(memory_space=pltpu.MemorySpace.SMEM)
    vmem = pl.BlockSpec(memory_space=pltpu.MemorySpace.VMEM)
    return pl.pallas_call(
        kernel,
        out_shape=jax.ShapeDtypeStruct((B, 2), jnp.float32),
        in_specs=[smem, smem] + [vmem] * 8,
        out_specs=vmem,
        scratch_shapes=[pltpu.VMEM((T * B, 4 * D), jnp.float32)],
    )(tokens1.astype(jnp.int32), tokens2.astype(jnp.int32),
      packed["emb1"], packed["emb2"], packed["wx"], packed["gb"],
      packed["whh"], packed["bhn"], packed["fcw"], packed["fcb"])


# --------------------------- pure-JAX reference --------------------------------
def _reference_forward(params, tokens1, tokens2, apply_softmax=False,
                       recurrent_dtype=jnp.float32):
    H = params["gru1_fwd_whh"].shape[-1]

    def gru_dir(emb, name, reverse):
        wih = params[name + "_wih"]; whh = params[name + "_whh"]
        bih = params[name + "_bih"]; bhh = params[name + "_bhh"]
        B, T, _ = emb.shape
        h = jnp.zeros((B, H), jnp.float32)
        order = range(T - 1, -1, -1) if reverse else range(T)
        for t in order:
            x = emb[:, t, :]
            hr = h.astype(recurrent_dtype)
            gh = [jnp.dot(hr, whh[g].astype(recurrent_dtype),
                          preferred_element_type=jnp.float32) for g in range(3)]
            r = jax.nn.sigmoid(x @ wih[0] + bih[0] + gh[0] + bhh[0])
            z = jax.nn.sigmoid(x @ wih[1] + bih[1] + gh[1] + bhh[1])
            n = jnp.tanh(x @ wih[2] + bih[2] + r * (gh[2] + bhh[2]))
            h = (1.0 - z) * n + z * h
        return h

    emb1 = jnp.take(params["emb1"], tokens1, axis=0).astype(jnp.float32)
    emb2 = jnp.take(params["emb2"], tokens2, axis=0).astype(jnp.float32)
    feat = jnp.concatenate(
        [gru_dir(emb1, "gru1_fwd", False), gru_dir(emb1, "gru1_bwd", True),
         gru_dir(emb2, "gru2_fwd", False), gru_dir(emb2, "gru2_bwd", True)], axis=1)
    scores = feat @ params["fc_w"] + params["fc_b"]
    if apply_softmax:
        scores = jax.nn.softmax(scores, axis=1)
    return scores


# --------------------------- deterministic params -----------------------------
def init_params(key, num_embeddings1, num_embeddings2, embedding_dim, rnn_hidden_size,
                padding_idx=0):
    D, H = embedding_dim, rnn_hidden_size
    keys = iter(jax.random.split(key, 32))

    emb1 = jax.random.normal(next(keys), (num_embeddings1, D), jnp.float32)
    emb1 = emb1.at[padding_idx].set(0.0)
    emb2 = jax.random.normal(next(keys), (num_embeddings2, D), jnp.float32)
    emb2 = emb2.at[padding_idx].set(0.0)
    params = {"emb1": emb1, "emb2": emb2}

    bound = 1.0 / math.sqrt(H)

    def gru_dir(prefix):
        params[prefix + "_wih"] = jax.random.uniform(next(keys), (3, D, H), jnp.float32,
                                                     -bound, bound)
        params[prefix + "_whh"] = jax.random.uniform(next(keys), (3, H, H), jnp.float32,
                                                     -bound, bound)
        params[prefix + "_bih"] = jax.random.uniform(next(keys), (3, 1, H), jnp.float32,
                                                     -bound, bound)
        params[prefix + "_bhh"] = jax.random.uniform(next(keys), (3, 1, H), jnp.float32,
                                                     -bound, bound)

    for prefix in _DIRS:
        gru_dir(prefix)

    fc_bound = 1.0 / math.sqrt(4 * H)
    params["fc_w"] = jax.random.uniform(next(keys), (4 * H, 2), jnp.float32,
                                        -fc_bound, fc_bound)
    params["fc_b"] = jax.random.uniform(next(keys), (1, 2), jnp.float32,
                                        -fc_bound, fc_bound)
    return params


# ---------------------------------- main ---------------------------------------
if __name__ == "__main__":
    num_embeddings1 = 50
    num_embeddings2 = 60
    embedding_dim = 32
    rnn_hidden_size = 16
    batch = 2
    seq_len = 8

    key = jax.random.PRNGKey(0)
    k_params, k_tok1, k_tok2 = jax.random.split(key, 3)

    params = init_params(k_params, num_embeddings1, num_embeddings2,
                         embedding_dim, rnn_hidden_size)
    packed = prepare_params(params)          # one-time packing, outside the forward jit

    tokens1 = jax.random.randint(k_tok1, (batch, seq_len), 0, num_embeddings1, jnp.int32)
    tokens2 = jax.random.randint(k_tok2, (batch, seq_len), 0, num_embeddings2, jnp.int32)
    tokens1 = tokens1.at[:, -1].set(0)   # exercise padding_idx rows (embed to zero)
    tokens2 = tokens2.at[:, -1].set(0)
    # TODO(synk): like the PyTorch reference (no pack_padded_sequence), padding tokens
    # are still run through the recurrence.

    scores = jax.block_until_ready(text_dsm_forward(packed, tokens1, tokens2,
                                                    apply_softmax=False))
    probs = jax.block_until_ready(text_dsm_forward(packed, tokens1, tokens2,
                                                   apply_softmax=True))

    # Tight check against a reference whose recurrent dot matches the kernel (bf16 x bf16
    # -> f32 accumulate), plus a loose check bounding the bf16 drift vs the pure-f32 model.
    ref_scores_bf16 = _reference_forward(params, tokens1, tokens2, apply_softmax=False,
                                         recurrent_dtype=jnp.bfloat16)
    ref_probs_bf16 = _reference_forward(params, tokens1, tokens2, apply_softmax=True,
                                        recurrent_dtype=jnp.bfloat16)
    ref_scores_f32 = _reference_forward(params, tokens1, tokens2, apply_softmax=False)
    ref_probs_f32 = _reference_forward(params, tokens1, tokens2, apply_softmax=True)

    assert scores.shape == (batch, 2) and probs.shape == (batch, 2)
    assert bool(jnp.all(jnp.isfinite(scores))) and bool(jnp.all(jnp.isfinite(probs)))
    assert bool(jnp.allclose(scores, ref_scores_bf16, rtol=1e-3, atol=1e-3)), \
        "score mismatch (bf16-matched ref)"
    assert bool(jnp.allclose(probs, ref_probs_bf16, rtol=1e-3, atol=1e-3)), \
        "prob mismatch (bf16-matched ref)"
    assert bool(jnp.allclose(scores, ref_scores_f32, rtol=2e-2, atol=2e-2)), \
        "score drift vs f32 ref"
    assert bool(jnp.allclose(probs, ref_probs_f32, rtol=2e-2, atol=2e-2)), \
        "prob drift vs f32 ref"
    print("KERNEL_OK")
</pallas_src>

<mosaic_0001>
module attributes {stable_mosaic.version = 11 : i64} {
  func.func @kernel(%arg0: memref<2x8xi32, #tpu.memory_space<smem>>, %arg1: memref<2x8xi32, #tpu.memory_space<smem>>, %arg2: memref<50x32xf32, #tpu.memory_space<vmem>>, %arg3: memref<60x32xf32, #tpu.memory_space<vmem>>, %arg4: memref<128x384xf32, #tpu.memory_space<vmem>>, %arg5: memref<1x384xf32, #tpu.memory_space<vmem>>, %arg6: memref<128x384xbf16, #tpu.memory_space<vmem>>, %arg7: memref<1x128xf32, #tpu.memory_space<vmem>>, %arg8: memref<128x2xf32, #tpu.memory_space<vmem>>, %arg9: memref<1x2xf32, #tpu.memory_space<vmem>>, %arg10: memref<2x2xf32, #tpu.memory_space<vmem>>, %arg11: memref<16x128xf32, #tpu.memory_space<vmem>>) attributes {dimension_semantics = [], scalar_prefetch = 0 : i64, scratch_operands = 1 : i64, tpu.core_type = #tpu.core_type<tc>} {
    %c0 = arith.constant 0 : index
    %c0_0 = arith.constant 0 : index
    %0 = memref.load %arg0[%c0, %c0_0] : memref<2x8xi32, #tpu.memory_space<smem>>
    %c0_1 = arith.constant 0 : index
    %c0_2 = arith.constant 0 : index
    %1 = memref.load %arg1[%c0_1, %c0_2] : memref<2x8xi32, #tpu.memory_space<smem>>
    %2 = arith.index_cast %0 : i32 to index
    %c0_3 = arith.constant 0 : index
    %3 = vector.load %arg2[%2, %c0_3] : memref<50x32xf32, #tpu.memory_space<vmem>>, vector<1x32xf32>
    %4 = arith.index_cast %1 : i32 to index
    %c0_4 = arith.constant 0 : index
    %5 = vector.load %arg3[%4, %c0_4] : memref<60x32xf32, #tpu.memory_space<vmem>>, vector<1x32xf32>
    %c0_5 = arith.constant 0 : index
    %c0_6 = arith.constant 0 : index
    %6 = vector.load %arg11[%c0_5, %c0_6] : memref<16x128xf32, #tpu.memory_space<vmem>>, vector<1x32xf32>
    tpu.vector_store %arg11[%c0_5, %c0_6], %3 {strides = array<i32>} : memref<16x128xf32, #tpu.memory_space<vmem>>, vector<1x32xf32>,
    %c14 = arith.constant 14 : index
    %c32 = arith.constant 32 : index
    %7 = vector.load %arg11[%c14, %c32] : memref<16x128xf32, #tpu.memory_space<vmem>>, vector<1x32xf32>
    tpu.vector_store %arg11[%c14, %c32], %3 {strides = array<i32>} : memref<16x128xf32, #tpu.memory_space<vmem>>, vector<1x32xf32>,
    %c0_7 = arith.constant 0 : index
    %c64 = arith.constant 64 : index
    %8 = vector.load %arg11[%c0_7, %c64] : memref<16x128xf32, #tpu.memory_space<vmem>>, vector<1x32xf32>
    tpu.vector_store %arg11[%c0_7, %c64], %5 {strides = array<i32>} : memref<16x128xf32, #tpu.memory_space<vmem>>, vector<1x32xf32>,
    %c14_8 = arith.constant 14 : index
    %c96 = arith.constant 96 : index
    %9 = vector.load %arg11[%c14_8, %c96] : memref<16x128xf32, #tpu.memory_space<vmem>>, vector<1x32xf32>
    tpu.vector_store %arg11[%c14_8, %c96], %5 {strides = array<i32>} : memref<16x128xf32, #tpu.memory_space<vmem>>, vector<1x32xf32>,
    %c1 = arith.constant 1 : index
    %c0_9 = arith.constant 0 : index
    %10 = memref.load %arg0[%c1, %c0_9] : memref<2x8xi32, #tpu.memory_space<smem>>
    %c1_10 = arith.constant 1 : index
    %c0_11 = arith.constant 0 : index
    %11 = memref.load %arg1[%c1_10, %c0_11] : memref<2x8xi32, #tpu.memory_space<smem>>
    %12 = arith.index_cast %10 : i32 to index
    %c0_12 = arith.constant 0 : index
    %13 = vector.load %arg2[%12, %c0_12] : memref<50x32xf32, #tpu.memory_space<vmem>>, vector<1x32xf32>
    %14 = arith.index_cast %11 : i32 to index
    %c0_13 = arith.constant 0 : index
    %15 = vector.load %arg3[%14, %c0_13] : memref<60x32xf32, #tpu.memory_space<vmem>>, vector<1x32xf32>
    %c1_14 = arith.constant 1 : index
    %c0_15 = arith.constant 0 : index
    %16 = vector.load %arg11[%c1_14, %c0_15] : memref<16x128xf32, #tpu.memory_space<vmem>>, vector<1x32xf32>
    tpu.vector_store %arg11[%c1_14, %c0_15], %13 {strides = array<i32>} : memref<16x128xf32, #tpu.memory_space<vmem>>, vector<1x32xf32>,
    %c15 = arith.constant 15 : index
    %c32_16 = arith.constant 32 : index
    %17 = vector.load %arg11[%c15, %c32_16] : memref<16x128xf32, #tpu.memory_space<vmem>>, vector<1x32xf32>
    tpu.vector_store %arg11[%c15, %c32_16], %13 {strides = array<i32>} : memref<16x128xf32, #tpu.memory_space<vmem>>, vector<1x32xf32>,
    %c1_17 = arith.constant 1 : index
    %c64_18 = arith.constant 64 : index
    %18 = vector.load %arg11[%c1_17, %c64_18] : memref<16x128xf32, #tpu.memory_space<vmem>>, vector<1x32xf32>
    tpu.vector_store %arg11[%c1_17, %c64_18], %15 {strides = array<i32>} : memref<16x128xf32, #tpu.memory_space<vmem>>, vector<1x32xf32>,
    %c15_19 = arith.constant 15 : index
    %c96_20 = arith.constant 96 : index
    %19 = vector.load %arg11[%c15_19, %c96_20] : memref<16x128xf32, #tpu.memory_space<vmem>>, vector<1x32xf32>
    tpu.vector_store %arg11[%c15_19, %c96_20], %15 {strides = array<i32>} : memref<16x128xf32, #tpu.memory_space<vmem>>, vector<1x32xf32>,
    %c0_21 = arith.constant 0 : index
    %c1_22 = arith.constant 1 : index
    %20 = memref.load %arg0[%c0_21, %c1_22] : memref<2x8xi32, #tpu.memory_space<smem>>
    %c0_23 = arith.constant 0 : index
    %c1_24 = arith.constant 1 : index
    %21 = memref.load %arg1[%c0_23, %c1_24] : memref<2x8xi32, #tpu.memory_space<smem>>
    %22 = arith.index_cast %20 : i32 to index
    %c0_25 = arith.constant 0 : index
    %23 = vector.load %arg2[%22, %c0_25] : memref<50x32xf32, #tpu.memory_space<vmem>>, vector<1x32xf32>
    %24 = arith.index_cast %21 : i32 to index
    %c0_26 = arith.constant 0 : index
    %25 = vector.load %arg3[%24, %c0_26] : memref<60x32xf32, #tpu.memory_space<vmem>>, vector<1x32xf32>
    %c2 = arith.constant 2 : index
    %c0_27 = arith.constant 0 : index
    %26 = vector.load %arg11[%c2, %c0_27] : memref<16x128xf32, #tpu.memory_space<vmem>>, vector<1x32xf32>
    tpu.vector_store %arg11[%c2, %c0_27], %23 {strides = array<i32>} : memref<16x128xf32, #tpu.memory_space<vmem>>, vector<1x32xf32>,
    %c12 = arith.constant 12 : index
    %c32_28 = arith.constant 32 : index
    %27 = vector.load %arg11[%c12, %c32_28] : memref<16x128xf32, #tpu.memory_space<vmem>>, vector<1x32xf32>
    tpu.vector_store %arg11[%c12, %c32_28], %23 {strides = array<i32>} : memref<16x128xf32, #tpu.memory_space<vmem>>, vector<1x32xf32>,
    %c2_29 = arith.constant 2 : index
    %c64_30 = arith.constant 64 : index
    %28 = vector.load %arg11[%c2_29, %c64_30] : memref<16x128xf32, #tpu.memory_space<vmem>>, vector<1x32xf32>
    tpu.vector_store %arg11[%c2_29, %c64_30], %25 {strides = array<i32>} : memref<16x128xf32, #tpu.memory_space<vmem>>, vector<1x32xf32>,
    %c12_31 = arith.constant 12 : index
    %c96_32 = arith.constant 96 : index
    %29 = vector.load %arg11[%c12_31, %c96_32] : memref<16x128xf32, #tpu.memory_space<vmem>>, vector<1x32xf32>
    tpu.vector_store %arg11[%c12_31, %c96_32], %25 {strides = array<i32>} : memref<16x128xf32, #tpu.memory_space<vmem>>, vector<1x32xf32>,
    %c1_33 = arith.constant 1 : index
    %c1_34 = arith.constant 1 : index
    %30 = memref.load %arg0[%c1_33, %c1_34] : memref<2x8xi32, #tpu.memory_space<smem>>
    %c1_35 = arith.constant 1 : index
    %c1_36 = arith.constant 1 : index
    %31 = memref.load %arg1[%c1_35, %c1_36] : memref<2x8xi32, #tpu.memory_space<smem>>
    %32 = arith.index_cast %30 : i32 to index
    %c0_37 = arith.constant 0 : index
    %33 = vector.load %arg2[%32, %c0_37] : memref<50x32xf32, #tpu.memory_space<vmem>>, vector<1x32xf32>
    %34 = arith.index_cast %31 : i32 to index
    %c0_38 = arith.constant 0 : index
    %35 = vector.load %arg3[%34, %c0_38] : memref<60x32xf32, #tpu.memory_space<vmem>>, vector<1x32xf32>
    %c3 = arith.constant 3 : index
    %c0_39 = arith.constant 0 : index
    %36 = vector.load %arg11[%c3, %c0_39] : memref<16x128xf32, #tpu.memory_space<vmem>>, vector<1x32xf32>
    tpu.vector_store %arg11[%c3, %c0_39], %33 {strides = array<i32>} : memref<16x128xf32, #tpu.memory_space<vmem>>, vector<1x32xf32>,
    %c13 = arith.constant 13 : index
    %c32_40 = arith.constant 32 : index
    %37 = vector.load %arg11[%c13, %c32_40] : memref<16x128xf32, #tpu.memory_space<vmem>>, vector<1x32xf32>
    tpu.vector_store %arg11[%c13, %c32_40], %33 {strides = array<i32>} : memref<16x128xf32, #tpu.memory_space<vmem>>, vector<1x32xf32>,
    %c3_41 = arith.constant 3 : index
    %c64_42 = arith.constant 64 : index
    %38 = vector.load %arg11[%c3_41, %c64_42] : memref<16x128xf32, #tpu.memory_space<vmem>>, vector<1x32xf32>
    tpu.vector_store %arg11[%c3_41, %c64_42], %35 {strides = array<i32>} : memref<16x128xf32, #tpu.memory_space<vmem>>, vector<1x32xf32>,
    %c13_43 = arith.constant 13 : index
    %c96_44 = arith.constant 96 : index
    %39 = vector.load %arg11[%c13_43, %c96_44] : memref<16x128xf32, #tpu.memory_space<vmem>>, vector<1x32xf32>
    tpu.vector_store %arg11[%c13_43, %c96_44], %35 {strides = array<i32>} : memref<16x128xf32, #tpu.memory_space<vmem>>, vector<1x32xf32>,
    %c0_45 = arith.constant 0 : index
    %c2_46 = arith.constant 2 : index
    %40 = memref.load %arg0[%c0_45, %c2_46] : memref<2x8xi32, #tpu.memory_space<smem>>
    %c0_47 = arith.constant 0 : index
    %c2_48 = arith.constant 2 : index
    %41 = memref.load %arg1[%c0_47, %c2_48] : memref<2x8xi32, #tpu.memory_space<smem>>
    %42 = arith.index_cast %40 : i32 to index
    %c0_49 = arith.constant 0 : index
    %43 = vector.load %arg2[%42, %c0_49] : memref<50x32xf32, #tpu.memory_space<vmem>>, vector<1x32xf32>
    %44 = arith.index_cast %41 : i32 to index
    %c0_50 = arith.constant 0 : index
    %45 = vector.load %arg3[%44, %c0_50] : memref<60x32xf32, #tpu.memory_space<vmem>>, vector<1x32xf32>
    %c4 = arith.constant 4 : index
    %c0_51 = arith.constant 0 : index
    %46 = vector.load %arg11[%c4, %c0_51] : memref<16x128xf32, #tpu.memory_space<vmem>>, vector<1x32xf32>
    tpu.vector_store %arg11[%c4, %c0_51], %43 {strides = array<i32>} : memref<16x128xf32, #tpu.memory_space<vmem>>, vector<1x32xf32>,
    %c10 = arith.constant 10 : index
    %c32_52 = arith.constant 32 : index
    %47 = vector.load %arg11[%c10, %c32_52] : memref<16x128xf32, #tpu.memory_space<vmem>>, vector<1x32xf32>
    tpu.vector_store %arg11[%c10, %c32_52], %43 {strides = array<i32>} : memref<16x128xf32, #tpu.memory_space<vmem>>, vector<1x32xf32>,
    %c4_53 = arith.constant 4 : index
    %c64_54 = arith.constant 64 : index
    %48 = vector.load %arg11[%c4_53, %c64_54] : memref<16x128xf32, #tpu.memory_space<vmem>>, vector<1x32xf32>
    tpu.vector_store %arg11[%c4_53, %c64_54], %45 {strides = array<i32>} : memref<16x128xf32, #tpu.memory_space<vmem>>, vector<1x32xf32>,
    %c10_55 = arith.constant 10 : index
    %c96_56 = arith.constant 96 : index
    %49 = vector.load %arg11[%c10_55, %c96_56] : memref<16x128xf32, #tpu.memory_space<vmem>>, vector<1x32xf32>
    tpu.vector_store %arg11[%c10_55, %c96_56], %45 {strides = array<i32>} : memref<16x128xf32, #tpu.memory_space<vmem>>, vector<1x32xf32>,
    %c1_57 = arith.constant 1 : index
    %c2_58 = arith.constant 2 : index
    %50 = memref.load %arg0[%c1_57, %c2_58] : memref<2x8xi32, #tpu.memory_space<smem>>
    %c1_59 = arith.constant 1 : index
    %c2_60 = arith.constant 2 : index
    %51 = memref.load %arg1[%c1_59, %c2_60] : memref<2x8xi32, #tpu.memory_space<smem>>
    %52 = arith.index_cast %50 : i32 to index
    %c0_61 = arith.constant 0 : index
    %53 = vector.load %arg2[%52, %c0_61] : memref<50x32xf32, #tpu.memory_space<vmem>>, vector<1x32xf32>
    %54 = arith.index_cast %51 : i32 to index
    %c0_62 = arith.constant 0 : index
    %55 = vector.load %arg3[%54, %c0_62] : memref<60x32xf32, #tpu.memory_space<vmem>>, vector<1x32xf32>
    %c5 = arith.constant 5 : index
    %c0_63 = arith.constant 0 : index
    %56 = vector.load %arg11[%c5, %c0_63] : memref<16x128xf32, #tpu.memory_space<vmem>>, vector<1x32xf32>
    tpu.vector_store %arg11[%c5, %c0_63], %53 {strides = array<i32>} : memref<16x128xf32, #tpu.memory_space<vmem>>, vector<1x32xf32>,
    %c11 = arith.constant 11 : index
    %c32_64 = arith.constant 32 : index
    %57 = vector.load %arg11[%c11, %c32_64] : memref<16x128xf32, #tpu.memory_space<vmem>>, vector<1x32xf32>
    tpu.vector_store %arg11[%c11, %c32_64], %53 {strides = array<i32>} : memref<16x128xf32, #tpu.memory_space<vmem>>, vector<1x32xf32>,
    %c5_65 = arith.constant 5 : index
    %c64_66 = arith.constant 64 : index
    %58 = vector.load %arg11[%c5_65, %c64_66] : memref<16x128xf32, #tpu.memory_space<vmem>>, vector<1x32xf32>
    tpu.vector_store %arg11[%c5_65, %c64_66], %55 {strides = array<i32>} : memref<16x128xf32, #tpu.memory_space<vmem>>, vector<1x32xf32>,
    %c11_67 = arith.constant 11 : index
    %c96_68 = arith.constant 96 : index
    %59 = vector.load %arg11[%c11_67, %c96_68] : memref<16x128xf32, #tpu.memory_space<vmem>>, vector<1x32xf32>
    tpu.vector_store %arg11[%c11_67, %c96_68], %55 {strides = array<i32>} : memref<16x128xf32, #tpu.memory_space<vmem>>, vector<1x32xf32>,
    %c0_69 = arith.constant 0 : index
    %c3_70 = arith.constant 3 : index
    %60 = memref.load %arg0[%c0_69, %c3_70] : memref<2x8xi32, #tpu.memory_space<smem>>
    %c0_71 = arith.constant 0 : index
    %c3_72 = arith.constant 3 : index
    %61 = memref.load %arg1[%c0_71, %c3_72] : memref<2x8xi32, #tpu.memory_space<smem>>
    %62 = arith.index_cast %60 : i32 to index
    %c0_73 = arith.constant 0 : index
    %63 = vector.load %arg2[%62, %c0_73] : memref<50x32xf32, #tpu.memory_space<vmem>>, vector<1x32xf32>
    %64 = arith.index_cast %61 : i32 to index
    %c0_74 = arith.constant 0 : index
    %65 = vector.load %arg3[%64, %c0_74] : memref<60x32xf32, #tpu.memory_space<vmem>>, vector<1x32xf32>
    %c6 = arith.constant 6 : index
    %c0_75 = arith.constant 0 : index
    %66 = vector.load %arg11[%c6, %c0_75] : memref<16x128xf32, #tpu.memory_space<vmem>>, vector<1x32xf32>
    tpu.vector_store %arg11[%c6, %c0_75], %63 {strides = array<i32>} : memref<16x128xf32, #tpu.memory_space<vmem>>, vector<1x32xf32>,
    %c8 = arith.constant 8 : index
    %c32_76 = arith.constant 32 : index
    %67 = vector.load %arg11[%c8, %c32_76] : memref<16x128xf32, #tpu.memory_space<vmem>>, vector<1x32xf32>
    tpu.vector_store %arg11[%c8, %c32_76], %63 {strides = array<i32>} : memref<16x128xf32, #tpu.memory_space<vmem>>, vector<1x32xf32>,
    %c6_77 = arith.constant 6 : index
    %c64_78 = arith.constant 64 : index
    %68 = vector.load %arg11[%c6_77, %c64_78] : memref<16x128xf32, #tpu.memory_space<vmem>>, vector<1x32xf32>
    tpu.vector_store %arg11[%c6_77, %c64_78], %65 {strides = array<i32>} : memref<16x128xf32, #tpu.memory_space<vmem>>, vector<1x32xf32>,
    %c8_79 = arith.constant 8 : index
    %c96_80 = arith.constant 96 : index
    %69 = vector.load %arg11[%c8_79, %c96_80] : memref<16x128xf32, #tpu.memory_space<vmem>>, vector<1x32xf32>
    tpu.vector_store %arg11[%c8_79, %c96_80], %65 {strides = array<i32>} : memref<16x128xf32, #tpu.memory_space<vmem>>, vector<1x32xf32>,
    %c1_81 = arith.constant 1 : index
    %c3_82 = arith.constant 3 : index
    %70 = memref.load %arg0[%c1_81, %c3_82] : memref<2x8xi32, #tpu.memory_space<smem>>
    %c1_83 = arith.constant 1 : index
    %c3_84 = arith.constant 3 : index
    %71 = memref.load %arg1[%c1_83, %c3_84] : memref<2x8xi32, #tpu.memory_space<smem>>
    %72 = arith.index_cast %70 : i32 to index
    %c0_85 = arith.constant 0 : index
    %73 = vector.load %arg2[%72, %c0_85] : memref<50x32xf32, #tpu.memory_space<vmem>>, vector<1x32xf32>
    %74 = arith.index_cast %71 : i32 to index
    %c0_86 = arith.constant 0 : index
    %75 = vector.load %arg3[%74, %c0_86] : memref<60x32xf32, #tpu.memory_space<vmem>>, vector<1x32xf32>
    %c7 = arith.constant 7 : index
    %c0_87 = arith.constant 0 : index
    %76 = vector.load %arg11[%c7, %c0_87] : memref<16x128xf32, #tpu.memory_space<vmem>>, vector<1x32xf32>
    tpu.vector_store %arg11[%c7, %c0_87], %73 {strides = array<i32>} : memref<16x128xf32, #tpu.memory_space<vmem>>, vector<1x32xf32>,
    %c9 = arith.constant 9 : index
    %c32_88 = arith.constant 32 : index
    %77 = vector.load %arg11[%c9, %c32_88] : memref<16x128xf32, #tpu.memory_space<vmem>>, vector<1x32xf32>
    tpu.vector_store %arg11[%c9, %c32_88], %73 {strides = array<i32>} : memref<16x128xf32, #tpu.memory_space<vmem>>, vector<1x32xf32>,
    %c7_89 = arith.constant 7 : index
    %c64_90 = arith.constant 64 : index
    %78 = vector.load %arg11[%c7_89, %c64_90] : memref<16x128xf32, #tpu.memory_space<vmem>>, vector<1x32xf32>
    tpu.vector_store %arg11[%c7_89, %c64_90], %75 {strides = array<i32>} : memref<16x128xf32, #tpu.memory_space<vmem>>, vector<1x32xf32>,
    %c9_91 = arith.constant 9 : index
    %c96_92 = arith.constant 96 : index
    %79 = vector.load %arg11[%c9_91, %c96_92] : memref<16x128xf32, #tpu.memory_space<vmem>>, vector<1x32xf32>
    tpu.vector_store %arg11[%c9_91, %c96_92], %75 {strides = array<i32>} : memref<16x128xf32, #tpu.memory_space<vmem>>, vector<1x32xf32>,
    %c0_93 = arith.constant 0 : index
    %c4_94 = arith.constant 4 : index
    %80 = memref.load %arg0[%c0_93, %c4_94] : memref<2x8xi32, #tpu.memory_space<smem>>
    %c0_95 = arith.constant 0 : index
    %c4_96 = arith.constant 4 : index
    %81 = memref.load %arg1[%c0_95, %c4_96] : memref<2x8xi32, #tpu.memory_space<smem>>
    %82 = arith.index_cast %80 : i32 to index
    %c0_97 = arith.constant 0 : index
    %83 = vector.load %arg2[%82, %c0_97] : memref<50x32xf32, #tpu.memory_space<vmem>>, vector<1x32xf32>
    %84 = arith.index_cast %81 : i32 to index
    %c0_98 = arith.constant 0 : index
    %85 = vector.load %arg3[%84, %c0_98] : memref<60x32xf32, #tpu.memory_space<vmem>>, vector<1x32xf32>
    %c8_99 = arith.constant 8 : index
    %c0_100 = arith.constant 0 : index
    %86 = vector.load %arg11[%c8_99, %c0_100] : memref<16x128xf32, #tpu.memory_space<vmem>>, vector<1x32xf32>
    tpu.vector_store %arg11[%c8_99, %c0_100], %83 {strides = array<i32>} : memref<16x128xf32, #tpu.memory_space<vmem>>, vector<1x32xf32>,
    %c6_101 = arith.constant 6 : index
    %c32_102 = arith.constant 32 : index
    %87 = vector.load %arg11[%c6_101, %c32_102] : memref<16x128xf32, #tpu.memory_space<vmem>>, vector<1x32xf32>
    tpu.vector_store %arg11[%c6_101, %c32_102], %83 {strides = array<i32>} : memref<16x128xf32, #tpu.memory_space<vmem>>, vector<1x32xf32>,
    %c8_103 = arith.constant 8 : index
    %c64_104 = arith.constant 64 : index
    %88 = vector.load %arg11[%c8_103, %c64_104] : memref<16x128xf32, #tpu.memory_space<vmem>>, vector<1x32xf32>
    tpu.vector_store %arg11[%c8_103, %c64_104], %85 {strides = array<i32>} : memref<16x128xf32, #tpu.memory_space<vmem>>, vector<1x32xf32>,
    %c6_105 = arith.constant 6 : index
    %c96_106 = arith.constant 96 : index
    %89 = vector.load %arg11[%c6_105, %c96_106] : memref<16x128xf32, #tpu.memory_space<vmem>>, vector<1x32xf32>
    tpu.vector_store %arg11[%c6_105, %c96_106], %85 {strides = array<i32>} : memref<16x128xf32, #tpu.memory_space<vmem>>, vector<1x32xf32>,
    %c1_107 = arith.constant 1 : index
    %c4_108 = arith.constant 4 : index
    %90 = memref.load %arg0[%c1_107, %c4_108] : memref<2x8xi32, #tpu.memory_space<smem>>
    %c1_109 = arith.constant 1 : index
    %c4_110 = arith.constant 4 : index
    %91 = memref.load %arg1[%c1_109, %c4_110] : memref<2x8xi32, #tpu.memory_space<smem>>
    %92 = arith.index_cast %90 : i32 to index
    %c0_111 = arith.constant 0 : index
    %93 = vector.load %arg2[%92, %c0_111] : memref<50x32xf32, #tpu.memory_space<vmem>>, vector<1x32xf32>
    %94 = arith.index_cast %91 : i32 to index
    %c0_112 = arith.constant 0 : index
    %95 = vector.load %arg3[%94, %c0_112] : memref<60x32xf32, #tpu.memory_space<vmem>>, vector<1x32xf32>
    %c9_113 = arith.constant 9 : index
    %c0_114 = arith.constant 0 : index
    %96 = vector.load %arg11[%c9_113, %c0_114] : memref<16x128xf32, #tpu.memory_space<vmem>>, vector<1x32xf32>
    tpu.vector_store %arg11[%c9_113, %c0_114], %93 {strides = array<i32>} : memref<16x128xf32, #tpu.memory_space<vmem>>, vector<1x32xf32>,
    %c7_115 = arith.constant 7 : index
    %c32_116 = arith.constant 32 : index
    %97 = vector.load %arg11[%c7_115, %c32_116] : memref<16x128xf32, #tpu.memory_space<vmem>>, vector<1x32xf32>
    tpu.vector_store %arg11[%c7_115, %c32_116], %93 {strides = array<i32>} : memref<16x128xf32, #tpu.memory_space<vmem>>, vector<1x32xf32>,
    %c9_117 = arith.constant 9 : index
    %c64_118 = arith.constant 64 : index
    %98 = vector.load %arg11[%c9_117, %c64_118] : memref<16x128xf32, #tpu.memory_space<vmem>>, vector<1x32xf32>
    tpu.vector_store %arg11[%c9_117, %c64_118], %95 {strides = array<i32>} : memref<16x128xf32, #tpu.memory_space<vmem>>, vector<1x32xf32>,
    %c7_119 = arith.constant 7 : index
    %c96_120 = arith.constant 96 : index
    %99 = vector.load %arg11[%c7_119, %c96_120] : memref<16x128xf32, #tpu.memory_space<vmem>>, vector<1x32xf32>
    tpu.vector_store %arg11[%c7_119, %c96_120], %95 {strides = array<i32>} : memref<16x128xf32, #tpu.memory_space<vmem>>, vector<1x32xf32>,
    %c0_121 = arith.constant 0 : index
    %c5_122 = arith.constant 5 : index
    %100 = memref.load %arg0[%c0_121, %c5_122] : memref<2x8xi32, #tpu.memory_space<smem>>
    %c0_123 = arith.constant 0 : index
    %c5_124 = arith.constant 5 : index
    %101 = memref.load %arg1[%c0_123, %c5_124] : memref<2x8xi32, #tpu.memory_space<smem>>
    %102 = arith.index_cast %100 : i32 to index
    %c0_125 = arith.constant 0 : index
    %103 = vector.load %arg2[%102, %c0_125] : memref<50x32xf32, #tpu.memory_space<vmem>>, vector<1x32xf32>
    %104 = arith.index_cast %101 : i32 to index
    %c0_126 = arith.constant 0 : index
    %105 = vector.load %arg3[%104, %c0_126] : memref<60x32xf32, #tpu.memory_space<vmem>>, vector<1x32xf32>
    %c10_127 = arith.constant 10 : index
    %c0_128 = arith.constant 0 : index
    %106 = vector.load %arg11[%c10_127, %c0_128] : memref<16x128xf32, #tpu.memory_space<vmem>>, vector<1x32xf32>
    tpu.vector_store %arg11[%c10_127, %c0_128], %103 {strides = array<i32>} : memref<16x128xf32, #tpu.memory_space<vmem>>, vector<1x32xf32>,
    %c4_129 = arith.constant 4 : index
    %c32_130 = arith.constant 32 : index
    %107 = vector.load %arg11[%c4_129, %c32_130] : memref<16x128xf32, #tpu.memory_space<vmem>>, vector<1x32xf32>
    tpu.vector_store %arg11[%c4_129, %c32_130], %103 {strides = array<i32>} : memref<16x128xf32, #tpu.memory_space<vmem>>, vector<1x32xf32>,
    %c10_131 = arith.constant 10 : index
    %c64_132 = arith.constant 64 : index
    %108 = vector.load %arg11[%c10_131, %c64_132] : memref<16x128xf32, #tpu.memory_space<vmem>>, vector<1x32xf32>
    tpu.vector_store %arg11[%c10_131, %c64_132], %105 {strides = array<i32>} : memref<16x128xf32, #tpu.memory_space<vmem>>, vector<1x32xf32>,
    %c4_133 = arith.constant 4 : index
    %c96_134 = arith.constant 96 : index
    %109 = vector.load %arg11[%c4_133, %c96_134] : memref<16x128xf32, #tpu.memory_space<vmem>>, vector<1x32xf32>
    tpu.vector_store %arg11[%c4_133, %c96_134], %105 {strides = array<i32>} : memref<16x128xf32, #tpu.memory_space<vmem>>, vector<1x32xf32>,
    %c1_135 = arith.constant 1 : index
    %c5_136 = arith.constant 5 : index
    %110 = memref.load %arg0[%c1_135, %c5_136] : memref<2x8xi32, #tpu.memory_space<smem>>
    %c1_137 = arith.constant 1 : index
    %c5_138 = arith.constant 5 : index
    %111 = memref.load %arg1[%c1_137, %c5_138] : memref<2x8xi32, #tpu.memory_space<smem>>
    %112 = arith.index_cast %110 : i32 to index
    %c0_139 = arith.constant 0 : index
    %113 = vector.load %arg2[%112, %c0_139] : memref<50x32xf32, #tpu.memory_space<vmem>>, vector<1x32xf32>
    %114 = arith.index_cast %111 : i32 to index
    %c0_140 = arith.constant 0 : index
    %115 = vector.load %arg3[%114, %c0_140] : memref<60x32xf32, #tpu.memory_space<vmem>>, vector<1x32xf32>
    %c11_141 = arith.constant 11 : index
    %c0_142 = arith.constant 0 : index
    %116 = vector.load %arg11[%c11_141, %c0_142] : memref<16x128xf32, #tpu.memory_space<vmem>>, vector<1x32xf32>
    tpu.vector_store %arg11[%c11_141, %c0_142], %113 {strides = array<i32>} : memref<16x128xf32, #tpu.memory_space<vmem>>, vector<1x32xf32>,
    %c5_143 = arith.constant 5 : index
    %c32_144 = arith.constant 32 : index
    %117 = vector.load %arg11[%c5_143, %c32_144] : memref<16x128xf32, #tpu.memory_space<vmem>>, vector<1x32xf32>
    tpu.vector_store %arg11[%c5_143, %c32_144], %113 {strides = array<i32>} : memref<16x128xf32, #tpu.memory_space<vmem>>, vector<1x32xf32>,
    %c11_145 = arith.constant 11 : index
    %c64_146 = arith.constant 64 : index
    %118 = vector.load %arg11[%c11_145, %c64_146] : memref<16x128xf32, #tpu.memory_space<vmem>>, vector<1x32xf32>
    tpu.vector_store %arg11[%c11_145, %c64_146], %115 {strides = array<i32>} : memref<16x128xf32, #tpu.memory_space<vmem>>, vector<1x32xf32>,
    %c5_147 = arith.constant 5 : index
    %c96_148 = arith.constant 96 : index
    %119 = vector.load %arg11[%c5_147, %c96_148] : memref<16x128xf32, #tpu.memory_space<vmem>>, vector<1x32xf32>
    tpu.vector_store %arg11[%c5_147, %c96_148], %115 {strides = array<i32>} : memref<16x128xf32, #tpu.memory_space<vmem>>, vector<1x32xf32>,
    %c0_149 = arith.constant 0 : index
    %c6_150 = arith.constant 6 : index
    %120 = memref.load %arg0[%c0_149, %c6_150] : memref<2x8xi32, #tpu.memory_space<smem>>
    %c0_151 = arith.constant 0 : index
    %c6_152 = arith.constant 6 : index
    %121 = memref.load %arg1[%c0_151, %c6_152] : memref<2x8xi32, #tpu.memory_space<smem>>
    %122 = arith.index_cast %120 : i32 to index
    %c0_153 = arith.constant 0 : index
    %123 = vector.load %arg2[%122, %c0_153] : memref<50x32xf32, #tpu.memory_space<vmem>>, vector<1x32xf32>
    %124 = arith.index_cast %121 : i32 to index
    %c0_154 = arith.constant 0 : index
    %125 = vector.load %arg3[%124, %c0_154] : memref<60x32xf32, #tpu.memory_space<vmem>>, vector<1x32xf32>
    %c12_155 = arith.constant 12 : index
    %c0_156 = arith.constant 0 : index
    %126 = vector.load %arg11[%c12_155, %c0_156] : memref<16x128xf32, #tpu.memory_space<vmem>>, vector<1x32xf32>
    tpu.vector_store %arg11[%c12_155, %c0_156], %123 {strides = array<i32>} : memref<16x128xf32, #tpu.memory_space<vmem>>, vector<1x32xf32>,
    %c2_157 = arith.constant 2 : index
    %c32_158 = arith.constant 32 : index
    %127 = vector.load %arg11[%c2_157, %c32_158] : memref<16x128xf32, #tpu.memory_space<vmem>>, vector<1x32xf32>
    tpu.vector_store %arg11[%c2_157, %c32_158], %123 {strides = array<i32>} : memref<16x128xf32, #tpu.memory_space<vmem>>, vector<1x32xf32>,
    %c12_159 = arith.constant 12 : index
    %c64_160 = arith.constant 64 : index
    %128 = vector.load %arg11[%c12_159, %c64_160] : memref<16x128xf32, #tpu.memory_space<vmem>>, vector<1x32xf32>
    tpu.vector_store %arg11[%c12_159, %c64_160], %125 {strides = array<i32>} : memref<16x128xf32, #tpu.memory_space<vmem>>, vector<1x32xf32>,
    %c2_161 = arith.constant 2 : index
    %c96_162 = arith.constant 96 : index
    %129 = vector.load %arg11[%c2_161, %c96_162] : memref<16x128xf32, #tpu.memory_space<vmem>>, vector<1x32xf32>
    tpu.vector_store %arg11[%c2_161, %c96_162], %125 {strides = array<i32>} : memref<16x128xf32, #tpu.memory_space<vmem>>, vector<1x32xf32>,
    %c1_163 = arith.constant 1 : index
    %c6_164 = arith.constant 6 : index
    %130 = memref.load %arg0[%c1_163, %c6_164] : memref<2x8xi32, #tpu.memory_space<smem>>
    %c1_165 = arith.constant 1 : index
    %c6_166 = arith.constant 6 : index
    %131 = memref.load %arg1[%c1_165, %c6_166] : memref<2x8xi32, #tpu.memory_space<smem>>
    %132 = arith.index_cast %130 : i32 to index
    %c0_167 = arith.constant 0 : index
    %133 = vector.load %arg2[%132, %c0_167] : memref<50x32xf32, #tpu.memory_space<vmem>>, vector<1x32xf32>
    %134 = arith.index_cast %131 : i32 to index
    %c0_168 = arith.constant 0 : index
    %135 = vector.load %arg3[%134, %c0_168] : memref<60x32xf32, #tpu.memory_space<vmem>>, vector<1x32xf32>
    %c13_169 = arith.constant 13 : index
    %c0_170 = arith.constant 0 : index
    %136 = vector.load %arg11[%c13_169, %c0_170] : memref<16x128xf32, #tpu.memory_space<vmem>>, vector<1x32xf32>
    tpu.vector_store %arg11[%c13_169, %c0_170], %133 {strides = array<i32>} : memref<16x128xf32, #tpu.memory_space<vmem>>, vector<1x32xf32>,
    %c3_171 = arith.constant 3 : index
    %c32_172 = arith.constant 32 : index
    %137 = vector.load %arg11[%c3_171, %c32_172] : memref<16x128xf32, #tpu.memory_space<vmem>>, vector<1x32xf32>
    tpu.vector_store %arg11[%c3_171, %c32_172], %133 {strides = array<i32>} : memref<16x128xf32, #tpu.memory_space<vmem>>, vector<1x32xf32>,
    %c13_173 = arith.constant 13 : index
    %c64_174 = arith.constant 64 : index
    %138 = vector.load %arg11[%c13_173, %c64_174] : memref<16x128xf32, #tpu.memory_space<vmem>>, vector<1x32xf32>
    tpu.vector_store %arg11[%c13_173, %c64_174], %135 {strides = array<i32>} : memref<16x128xf32, #tpu.memory_space<vmem>>, vector<1x32xf32>,
    %c3_175 = arith.constant 3 : index
    %c96_176 = arith.constant 96 : index
    %139 = vector.load %arg11[%c3_175, %c96_176] : memref<16x128xf32, #tpu.memory_space<vmem>>, vector<1x32xf32>
    tpu.vector_store %arg11[%c3_175, %c96_176], %135 {strides = array<i32>} : memref<16x128xf32, #tpu.memory_space<vmem>>, vector<1x32xf32>,
    %c0_177 = arith.constant 0 : index
    %c7_178 = arith.constant 7 : index
    %140 = memref.load %arg0[%c0_177, %c7_178] : memref<2x8xi32, #tpu.memory_space<smem>>
    %c0_179 = arith.constant 0 : index
    %c7_180 = arith.constant 7 : index
    %141 = memref.load %arg1[%c0_179, %c7_180] : memref<2x8xi32, #tpu.memory_space<smem>>
    %142 = arith.index_cast %140 : i32 to index
    %c0_181 = arith.constant 0 : index
    %143 = vector.load %arg2[%142, %c0_181] : memref<50x32xf32, #tpu.memory_space<vmem>>, vector<1x32xf32>
    %144 = arith.index_cast %141 : i32 to index
    %c0_182 = arith.constant 0 : index
    %145 = vector.load %arg3[%144, %c0_182] : memref<60x32xf32, #tpu.memory_space<vmem>>, vector<1x32xf32>
    %c14_183 = arith.constant 14 : index
    %c0_184 = arith.constant 0 : index
    %146 = vector.load %arg11[%c14_183, %c0_184] : memref<16x128xf32, #tpu.memory_space<vmem>>, vector<1x32xf32>
    tpu.vector_store %arg11[%c14_183, %c0_184], %143 {strides = array<i32>} : memref<16x128xf32, #tpu.memory_space<vmem>>, vector<1x32xf32>,
    %c0_185 = arith.constant 0 : index
    %c32_186 = arith.constant 32 : index
    %147 = vector.load %arg11[%c0_185, %c32_186] : memref<16x128xf32, #tpu.memory_space<vmem>>, vector<1x32xf32>
    tpu.vector_store %arg11[%c0_185, %c32_186], %143 {strides = array<i32>} : memref<16x128xf32, #tpu.memory_space<vmem>>, vector<1x32xf32>,
    %c14_187 = arith.constant 14 : index
    %c64_188 = arith.constant 64 : index
    %148 = vector.load %arg11[%c14_187, %c64_188] : memref<16x128xf32, #tpu.memory_space<vmem>>, vector<1x32xf32>
    tpu.vector_store %arg11[%c14_187, %c64_188], %145 {strides = array<i32>} : memref<16x128xf32, #tpu.memory_space<vmem>>, vector<1x32xf32>,
    %c0_189 = arith.constant 0 : index
    %c96_190 = arith.constant 96 : index
    %149 = vector.load %arg11[%c0_189, %c96_190] : memref<16x128xf32, #tpu.memory_space<vmem>>, vector<1x32xf32>
    tpu.vector_store %arg11[%c0_189, %c96_190], %145 {strides = array<i32>} : memref<16x128xf32, #tpu.memory_space<vmem>>, vector<1x32xf32>,
    %c1_191 = arith.constant 1 : index
    %c7_192 = arith.constant 7 : index
    %150 = memref.load %arg0[%c1_191, %c7_192] : memref<2x8xi32, #tpu.memory_space<smem>>
    %c1_193 = arith.constant 1 : index
    %c7_194 = arith.constant 7 : index
    %151 = memref.load %arg1[%c1_193, %c7_194] : memref<2x8xi32, #tpu.memory_space<smem>>
    %152 = arith.index_cast %150 : i32 to index
    %c0_195 = arith.constant 0 : index
    %153 = vector.load %arg2[%152, %c0_195] : memref<50x32xf32, #tpu.memory_space<vmem>>, vector<1x32xf32>
    %154 = arith.index_cast %151 : i32 to index
    %c0_196 = arith.constant 0 : index
    %155 = vector.load %arg3[%154, %c0_196] : memref<60x32xf32, #tpu.memory_space<vmem>>, vector<1x32xf32>
    %c15_197 = arith.constant 15 : index
    %c0_198 = arith.constant 0 : index
    %156 = vector.load %arg11[%c15_197, %c0_198] : memref<16x128xf32, #tpu.memory_space<vmem>>, vector<1x32xf32>
    tpu.vector_store %arg11[%c15_197, %c0_198], %153 {strides = array<i32>} : memref<16x128xf32, #tpu.memory_space<vmem>>, vector<1x32xf32>,
    %c1_199 = arith.constant 1 : index
    %c32_200 = arith.constant 32 : index
    %157 = vector.load %arg11[%c1_199, %c32_200] : memref<16x128xf32, #tpu.memory_space<vmem>>, vector<1x32xf32>
    tpu.vector_store %arg11[%c1_199, %c32_200], %153 {strides = array<i32>} : memref<16x128xf32, #tpu.memory_space<vmem>>, vector<1x32xf32>,
    %c15_201 = arith.constant 15 : index
    %c64_202 = arith.constant 64 : index
    %158 = vector.load %arg11[%c15_201, %c64_202] : memref<16x128xf32, #tpu.memory_space<vmem>>, vector<1x32xf32>
    tpu.vector_store %arg11[%c15_201, %c64_202], %155 {strides = array<i32>} : memref<16x128xf32, #tpu.memory_space<vmem>>, vector<1x32xf32>,
    %c1_203 = arith.constant 1 : index
    %c96_204 = arith.constant 96 : index
    %159 = vector.load %arg11[%c1_203, %c96_204] : memref<16x128xf32, #tpu.memory_space<vmem>>, vector<1x32xf32>
    tpu.vector_store %arg11[%c1_203, %c96_204], %155 {strides = array<i32>} : memref<16x128xf32, #tpu.memory_space<vmem>>, vector<1x32xf32>,
    %c0_205 = arith.constant 0 : index
    %c0_206 = arith.constant 0 : index
    %160 = vector.load %arg11[%c0_205, %c0_206] : memref<16x128xf32, #tpu.memory_space<vmem>>, vector<16x128xf32>
    %c0_207 = arith.constant 0 : index
    %c0_208 = arith.constant 0 : index
    %161 = vector.load %arg4[%c0_207, %c0_208] : memref<128x384xf32, #tpu.memory_space<vmem>>, vector<128x384xf32>
    %cst = arith.constant dense<0.000000e+00> : vector<16x384xf32>
    %162 = tpu.matmul %160, %161, %cst {dimension_numbers = #tpu.dot_dimension_numbers<[1], [0], [0], [1], [0, 0, 1, 1], [], []>} : vector<16x128xf32>, vector<128x384xf32>, vector<16x384xf32> -> vector<16x384xf32>
    %c0_209 = arith.constant 0 : index
    %c0_210 = arith.constant 0 : index
    %163 = vector.load %arg5[%c0_209, %c0_210] : memref<1x384xf32, #tpu.memory_space<vmem>>, vector<1x384xf32>
    %164 = vector.broadcast %163 : vector<1x384xf32> to vector<16x384xf32>
    %165 = arith.addf %162, %164 : vector<16x384xf32>
    %c0_211 = arith.constant 0 : index
    %c0_212 = arith.constant 0 : index
    %166 = vector.load %arg6[%c0_211, %c0_212] : memref<128x384xbf16, #tpu.memory_space<vmem>>, vector<128x384xbf16>
    %c0_213 = arith.constant 0 : index
    %c0_214 = arith.constant 0 : index
    %167 = vector.load %arg7[%c0_213, %c0_214] : memref<1x128xf32, #tpu.memory_space<vmem>>, vector<1x128xf32>
    %cst_215 = arith.constant 0.000000e+00 : f32
    %168 = vector.broadcast %cst_215 : f32 to vector<2x128xf32>
    %169 = vector.extract_strided_slice %165 {offsets = [0, 0], sizes = [2, 384], strides = [1, 1]} : vector<16x384xf32> to vector<2x384xf32>
    %170 = arith.truncf %168 : vector<2x128xf32> to vector<2x128xbf16>
    %cst_216 = arith.constant dense<0.000000e+00> : vector<2x384xf32>
    %171 = tpu.matmul %170, %166, %cst_216 {dimension_numbers = #tpu.dot_dimension_numbers<[1], [0], [0], [1], [0, 0, 1, 1], [], []>} : vector<2x128xbf16>, vector<128x384xbf16>, vector<2x384xf32> -> vector<2x384xf32>
    %172 = vector.extract_strided_slice %169 {offsets = [0, 0], sizes = [2, 128], strides = [1, 1]} : vector<2x384xf32> to vector<2x128xf32>
    %173 = vector.extract_strided_slice %171 {offsets = [0, 0], sizes = [2, 128], strides = [1, 1]} : vector<2x384xf32> to vector<2x128xf32>
    %174 = arith.addf %172, %173 : vector<2x128xf32>
    %175 = arith.negf %174 : vector<2x128xf32>
    %176 = math.exp %175 : vector<2x128xf32>
    %cst_217 = arith.constant 1.000000e+00 : f32
    %177 = vector.broadcast %cst_217 : f32 to vector<2x128xf32>
    %178 = arith.addf %177, %176 : vector<2x128xf32>
    %179 = arith.divf %177, %178 : vector<2x128xf32>
    %180 = vector.extract_strided_slice %169 {offsets = [0, 128], sizes = [2, 128], strides = [1, 1]} : vector<2x384xf32> to vector<2x128xf32>
    %181 = vector.extract_strided_slice %171 {offsets = [0, 128], sizes = [2, 128], strides = [1, 1]} : vector<2x384xf32> to vector<2x128xf32>
    %182 = arith.addf %180, %181 : vector<2x128xf32>
    %183 = arith.negf %182 : vector<2x128xf32>
    %184 = math.exp %183 : vector<2x128xf32>
    %cst_218 = arith.constant 1.000000e+00 : f32
    %185 = vector.broadcast %cst_218 : f32 to vector<2x128xf32>
    %186 = arith.addf %185, %184 : vector<2x128xf32>
    %187 = arith.divf %185, %186 : vector<2x128xf32>
    %188 = vector.extract_strided_slice %169 {offsets = [0, 256], sizes = [2, 128], strides = [1, 1]} : vector<2x384xf32> to vector<2x128xf32>
    %189 = vector.extract_strided_slice %171 {offsets = [0, 256], sizes = [2, 128], strides = [1, 1]} : vector<2x384xf32> to vector<2x128xf32>
    %190 = vector.broadcast %167 : vector<1x128xf32> to vector<2x128xf32>
    %191 = arith.addf %189, %190 : vector<2x128xf32>
    %192 = arith.mulf %179, %191 : vector<2x128xf32>
    %193 = arith.addf %188, %192 : vector<2x128xf32>
    %194 = math.tanh %193 : vector<2x128xf32>
    %cst_219 = arith.constant 1.000000e+00 : f32
    %195 = vector.broadcast %cst_219 : f32 to vector<2x128xf32>
    %196 = arith.subf %195, %187 : vector<2x128xf32>
    %197 = arith.mulf %196, %194 : vector<2x128xf32>
    %198 = arith.mulf %187, %168 : vector<2x128xf32>
    %199 = arith.addf %197, %198 : vector<2x128xf32>
    %200 = vector.extract_strided_slice %165 {offsets = [2, 0], sizes = [2, 384], strides = [1, 1]} : vector<16x384xf32> to vector<2x384xf32>
    %201 = arith.truncf %199 : vector<2x128xf32> to vector<2x128xbf16>
    %cst_220 = arith.constant dense<0.000000e+00> : vector<2x384xf32>
    %202 = tpu.matmul %201, %166, %cst_220 {dimension_numbers = #tpu.dot_dimension_numbers<[1], [0], [0], [1], [0, 0, 1, 1], [], []>} : vector<2x128xbf16>, vector<128x384xbf16>, vector<2x384xf32> -> vector<2x384xf32>
    %203 = vector.extract_strided_slice %200 {offsets = [0, 0], sizes = [2, 128], strides = [1, 1]} : vector<2x384xf32> to vector<2x128xf32>
    %204 = vector.extract_strided_slice %202 {offsets = [0, 0], sizes = [2, 128], strides = [1, 1]} : vector<2x384xf32> to vector<2x128xf32>
    %205 = arith.addf %203, %204 : vector<2x128xf32>
    %206 = arith.negf %205 : vector<2x128xf32>
    %207 = math.exp %206 : vector<2x128xf32>
    %cst_221 = arith.constant 1.000000e+00 : f32
    %208 = vector.broadcast %cst_221 : f32 to vector<2x128xf32>
    %209 = arith.addf %208, %207 : vector<2x128xf32>
    %210 = arith.divf %208, %209 : vector<2x128xf32>
    %211 = vector.extract_strided_slice %200 {offsets = [0, 128], sizes = [2, 128], strides = [1, 1]} : vector<2x384xf32> to vector<2x128xf32>
    %212 = vector.extract_strided_slice %202 {offsets = [0, 128], sizes = [2, 128], strides = [1, 1]} : vector<2x384xf32> to vector<2x128xf32>
    %213 = arith.addf %211, %212 : vector<2x128xf32>
    %214 = arith.negf %213 : vector<2x128xf32>
    %215 = math.exp %214 : vector<2x128xf32>
    %cst_222 = arith.constant 1.000000e+00 : f32
    %216 = vector.broadcast %cst_222 : f32 to vector<2x128xf32>
    %217 = arith.addf %216, %215 : vector<2x128xf32>
    %218 = arith.divf %216, %217 : vector<2x128xf32>
    %219 = vector.extract_strided_slice %200 {offsets = [0, 256], sizes = [2, 128], strides = [1, 1]} : vector<2x384xf32> to vector<2x128xf32>
    %220 = vector.extract_strided_slice %202 {offsets = [0, 256], sizes = [2, 128], strides = [1, 1]} : vector<2x384xf32> to vector<2x128xf32>
    %221 = vector.broadcast %167 : vector<1x128xf32> to vector<2x128xf32>
    %222 = arith.addf %220, %221 : vector<2x128xf32>
    %223 = arith.mulf %210, %222 : vector<2x128xf32>
    %224 = arith.addf %219, %223 : vector<2x128xf32>
    %225 = math.tanh %224 : vector<2x128xf32>
    %cst_223 = arith.constant 1.000000e+00 : f32
    %226 = vector.broadcast %cst_223 : f32 to vector<2x128xf32>
    %227 = arith.subf %226, %218 : vector<2x128xf32>
    %228 = arith.mulf %227, %225 : vector<2x128xf32>
    %229 = arith.mulf %218, %199 : vector<2x128xf32>
    %230 = arith.addf %228, %229 : vector<2x128xf32>
    %231 = vector.extract_strided_slice %165 {offsets = [4, 0], sizes = [2, 384], strides = [1, 1]} : vector<16x384xf32> to vector<2x384xf32>
    %232 = arith.truncf %230 : vector<2x128xf32> to vector<2x128xbf16>
    %cst_224 = arith.constant dense<0.000000e+00> : vector<2x384xf32>
    %233 = tpu.matmul %232, %166, %cst_224 {dimension_numbers = #tpu.dot_dimension_numbers<[1], [0], [0], [1], [0, 0, 1, 1], [], []>} : vector<2x128xbf16>, vector<128x384xbf16>, vector<2x384xf32> -> vector<2x384xf32>
    %234 = vector.extract_strided_slice %231 {offsets = [0, 0], sizes = [2, 128], strides = [1, 1]} : vector<2x384xf32> to vector<2x128xf32>
    %235 = vector.extract_strided_slice %233 {offsets = [0, 0], sizes = [2, 128], strides = [1, 1]} : vector<2x384xf32> to vector<2x128xf32>
    %236 = arith.addf %234, %235 : vector<2x128xf32>
    %237 = arith.negf %236 : vector<2x128xf32>
    %238 = math.exp %237 : vector<2x128xf32>
    %cst_225 = arith.constant 1.000000e+00 : f32
    %239 = vector.broadcast %cst_225 : f32 to vector<2x128xf32>
    %240 = arith.addf %239, %238 : vector<2x128xf32>
    %241 = arith.divf %239, %240 : vector<2x128xf32>
    %242 = vector.extract_strided_slice %231 {offsets = [0, 128], sizes = [2, 128], strides = [1, 1]} : vector<2x384xf32> to vector<2x128xf32>
    %243 = vector.extract_strided_slice %233 {offsets = [0, 128], sizes = [2, 128], strides = [1, 1]} : vector<2x384xf32> to vector<2x128xf32>
    %244 = arith.addf %242, %243 : vector<2x128xf32>
    %245 = arith.negf %244 : vector<2x128xf32>
    %246 = math.exp %245 : vector<2x128xf32>
    %cst_226 = arith.constant 1.000000e+00 : f32
    %247 = vector.broadcast %cst_226 : f32 to vector<2x128xf32>
    %248 = arith.addf %247, %246 : vector<2x128xf32>
    %249 = arith.divf %247, %248 : vector<2x128xf32>
    %250 = vector.extract_strided_slice %231 {offsets = [0, 256], sizes = [2, 128], strides = [1, 1]} : vector<2x384xf32> to vector<2x128xf32>
    %251 = vector.extract_strided_slice %233 {offsets = [0, 256], sizes = [2, 128], strides = [1, 1]} : vector<2x384xf32> to vector<2x128xf32>
    %252 = vector.broadcast %167 : vector<1x128xf32> to vector<2x128xf32>
    %253 = arith.addf %251, %252 : vector<2x128xf32>
    %254 = arith.mulf %241, %253 : vector<2x128xf32>
    %255 = arith.addf %250, %254 : vector<2x128xf32>
    %256 = math.tanh %255 : vector<2x128xf32>
    %cst_227 = arith.constant 1.000000e+00 : f32
    %257 = vector.broadcast %cst_227 : f32 to vector<2x128xf32>
    %258 = arith.subf %257, %249 : vector<2x128xf32>
    %259 = arith.mulf %258, %256 : vector<2x128xf32>
    %260 = arith.mulf %249, %230 : vector<2x128xf32>
    %261 = arith.addf %259, %260 : vector<2x128xf32>
    %262 = vector.extract_strided_slice %165 {offsets = [6, 0], sizes = [2, 384], strides = [1, 1]} : vector<16x384xf32> to vector<2x384xf32>
    %263 = arith.truncf %261 : vector<2x128xf32> to vector<2x128xbf16>
    %cst_228 = arith.constant dense<0.000000e+00> : vector<2x384xf32>
    %264 = tpu.matmul %263, %166, %cst_228 {dimension_numbers = #tpu.dot_dimension_numbers<[1], [0], [0], [1], [0, 0, 1, 1], [], []>} : vector<2x128xbf16>, vector<128x384xbf16>, vector<2x384xf32> -> vector<2x384xf32>
    %265 = vector.extract_strided_slice %262 {offsets = [0, 0], sizes = [2, 128], strides = [1, 1]} : vector<2x384xf32> to vector<2x128xf32>
    %266 = vector.extract_strided_slice %264 {offsets = [0, 0], sizes = [2, 128], strides = [1, 1]} : vector<2x384xf32> to vector<2x128xf32>
    %267 = arith.addf %265, %266 : vector<2x128xf32>
    %268 = arith.negf %267 : vector<2x128xf32>
    %269 = math.exp %268 : vector<2x128xf32>
    %cst_229 = arith.constant 1.000000e+00 : f32
    %270 = vector.broadcast %cst_229 : f32 to vector<2x128xf32>
    %271 = arith.addf %270, %269 : vector<2x128xf32>
    %272 = arith.divf %270, %271 : vector<2x128xf32>
    %273 = vector.extract_strided_slice %262 {offsets = [0, 128], sizes = [2, 128], strides = [1, 1]} : vector<2x384xf32> to vector<2x128xf32>
    %274 = vector.extract_strided_slice %264 {offsets = [0, 128], sizes = [2, 128], strides = [1, 1]} : vector<2x384xf32> to vector<2x128xf32>
    %275 = arith.addf %273, %274 : vector<2x128xf32>
    %276 = arith.negf %275 : vector<2x128xf32>
    %277 = math.exp %276 : vector<2x128xf32>
    %cst_230 = arith.constant 1.000000e+00 : f32
    %278 = vector.broadcast %cst_230 : f32 to vector<2x128xf32>
    %279 = arith.addf %278, %277 : vector<2x128xf32>
    %280 = arith.divf %278, %279 : vector<2x128xf32>
    %281 = vector.extract_strided_slice %262 {offsets = [0, 256], sizes = [2, 128], strides = [1, 1]} : vector<2x384xf32> to vector<2x128xf32>
    %282 = vector.extract_strided_slice %264 {offsets = [0, 256], sizes = [2, 128], strides = [1, 1]} : vector<2x384xf32> to vector<2x128xf32>
    %283 = vector.broadcast %167 : vector<1x128xf32> to vector<2x128xf32>
    %284 = arith.addf %282, %283 : vector<2x128xf32>
    %285 = arith.mulf %272, %284 : vector<2x128xf32>
    %286 = arith.addf %281, %285 : vector<2x128xf32>
    %287 = math.tanh %286 : vector<2x128xf32>
    %cst_231 = arith.constant 1.000000e+00 : f32
    %288 = vector.broadcast %cst_231 : f32 to vector<2x128xf32>
    %289 = arith.subf %288, %280 : vector<2x128xf32>
    %290 = arith.mulf %289, %287 : vector<2x128xf32>
    %291 = arith.mulf %280, %261 : vector<2x128xf32>
    %292 = arith.addf %290, %291 : vector<2x128xf32>
    %293 = vector.extract_strided_slice %165 {offsets = [8, 0], sizes = [2, 384], strides = [1, 1]} : vector<16x384xf32> to vector<2x384xf32>
    %294 = arith.truncf %292 : vector<2x128xf32> to vector<2x128xbf16>
    %cst_232 = arith.constant dense<0.000000e+00> : vector<2x384xf32>
    %295 = tpu.matmul %294, %166, %cst_232 {dimension_numbers = #tpu.dot_dimension_numbers<[1], [0], [0], [1], [0, 0, 1, 1], [], []>} : vector<2x128xbf16>, vector<128x384xbf16>, vector<2x384xf32> -> vector<2x384xf32>
    %296 = vector.extract_strided_slice %293 {offsets = [0, 0], sizes = [2, 128], strides = [1, 1]} : vector<2x384xf32> to vector<2x128xf32>
    %297 = vector.extract_strided_slice %295 {offsets = [0, 0], sizes = [2, 128], strides = [1, 1]} : vector<2x384xf32> to vector<2x128xf32>
    %298 = arith.addf %296, %297 : vector<2x128xf32>
    %299 = arith.negf %298 : vector<2x128xf32>
    %300 = math.exp %299 : vector<2x128xf32>
    %cst_233 = arith.constant 1.000000e+00 : f32
    %301 = vector.broadcast %cst_233 : f32 to vector<2x128xf32>
    %302 = arith.addf %301, %300 : vector<2x128xf32>
    %303 = arith.divf %301, %302 : vector<2x128xf32>
    %304 = vector.extract_strided_slice %293 {offsets = [0, 128], sizes = [2, 128], strides = [1, 1]} : vector<2x384xf32> to vector<2x128xf32>
    %305 = vector.extract_strided_slice %295 {offsets = [0, 128], sizes = [2, 128], strides = [1, 1]} : vector<2x384xf32> to vector<2x128xf32>
    %306 = arith.addf %304, %305 : vector<2x128xf32>
    %307 = arith.negf %306 : vector<2x128xf32>
    %308 = math.exp %307 : vector<2x128xf32>
    %cst_234 = arith.constant 1.000000e+00 : f32
    %309 = vector.broadcast %cst_234 : f32 to vector<2x128xf32>
    %310 = arith.addf %309, %308 : vector<2x128xf32>
    %311 = arith.divf %309, %310 : vector<2x128xf32>
    %312 = vector.extract_strided_slice %293 {offsets = [0, 256], sizes = [2, 128], strides = [1, 1]} : vector<2x384xf32> to vector<2x128xf32>
    %313 = vector.extract_strided_slice %295 {offsets = [0, 256], sizes = [2, 128], strides = [1, 1]} : vector<2x384xf32> to vector<2x128xf32>
    %314 = vector.broadcast %167 : vector<1x128xf32> to vector<2x128xf32>
    %315 = arith.addf %313, %314 : vector<2x128xf32>
    %316 = arith.mulf %303, %315 : vector<2x128xf32>
    %317 = arith.addf %312, %316 : vector<2x128xf32>
    %318 = math.tanh %317 : vector<2x128xf32>
    %cst_235 = arith.constant 1.000000e+00 : f32
    %319 = vector.broadcast %cst_235 : f32 to vector<2x128xf32>
    %320 = arith.subf %319, %311 : vector<2x128xf32>
    %321 = arith.mulf %320, %318 : vector<2x128xf32>
    %322 = arith.mulf %311, %292 : vector<2x128xf32>
    %323 = arith.addf %321, %322 : vector<2x128xf32>
    %324 = vector.extract_strided_slice %165 {offsets = [10, 0], sizes = [2, 384], strides = [1, 1]} : vector<16x384xf32> to vector<2x384xf32>
    %325 = arith.truncf %323 : vector<2x128xf32> to vector<2x128xbf16>
    %cst_236 = arith.constant dense<0.000000e+00> : vector<2x384xf32>
    %326 = tpu.matmul %325, %166, %cst_236 {dimension_numbers = #tpu.dot_dimension_numbers<[1], [0], [0], [1], [0, 0, 1, 1], [], []>} : vector<2x128xbf16>, vector<128x384xbf16>, vector<2x384xf32> -> vector<2x384xf32>
    %327 = vector.extract_strided_slice %324 {offsets = [0, 0], sizes = [2, 128], strides = [1, 1]} : vector<2x384xf32> to vector<2x128xf32>
    %328 = vector.extract_strided_slice %326 {offsets = [0, 0], sizes = [2, 128], strides = [1, 1]} : vector<2x384xf32> to vector<2x128xf32>
    %329 = arith.addf %327, %328 : vector<2x128xf32>
    %330 = arith.negf %329 : vector<2x128xf32>
    %331 = math.exp %330 : vector<2x128xf32>
    %cst_237 = arith.constant 1.000000e+00 : f32
    %332 = vector.broadcast %cst_237 : f32 to vector<2x128xf32>
    %333 = arith.addf %332, %331 : vector<2x128xf32>
    %334 = arith.divf %332, %333 : vector<2x128xf32>
    %335 = vector.extract_strided_slice %324 {offsets = [0, 128], sizes = [2, 128], strides = [1, 1]} : vector<2x384xf32> to vector<2x128xf32>
    %336 = vector.extract_strided_slice %326 {offsets = [0, 128], sizes = [2, 128], strides = [1, 1]} : vector<2x384xf32> to vector<2x128xf32>
    %337 = arith.addf %335, %336 : vector<2x128xf32>
    %338 = arith.negf %337 : vector<2x128xf32>
    %339 = math.exp %338 : vector<2x128xf32>
    %cst_238 = arith.constant 1.000000e+00 : f32
    %340 = vector.broadcast %cst_238 : f32 to vector<2x128xf32>
    %341 = arith.addf %340, %339 : vector<2x128xf32>
    %342 = arith.divf %340, %341 : vector<2x128xf32>
    %343 = vector.extract_strided_slice %324 {offsets = [0, 256], sizes = [2, 128], strides = [1, 1]} : vector<2x384xf32> to vector<2x128xf32>
    %344 = vector.extract_strided_slice %326 {offsets = [0, 256], sizes = [2, 128], strides = [1, 1]} : vector<2x384xf32> to vector<2x128xf32>
    %345 = vector.broadcast %167 : vector<1x128xf32> to vector<2x128xf32>
    %346 = arith.addf %344, %345 : vector<2x128xf32>
    %347 = arith.mulf %334, %346 : vector<2x128xf32>
    %348 = arith.addf %343, %347 : vector<2x128xf32>
    %349 = math.tanh %348 : vector<2x128xf32>
    %cst_239 = arith.constant 1.000000e+00 : f32
    %350 = vector.broadcast %cst_239 : f32 to vector<2x128xf32>
    %351 = arith.subf %350, %342 : vector<2x128xf32>
    %352 = arith.mulf %351, %349 : vector<2x128xf32>
    %353 = arith.mulf %342, %323 : vector<2x128xf32>
    %354 = arith.addf %352, %353 : vector<2x128xf32>
    %355 = vector.extract_strided_slice %165 {offsets = [12, 0], sizes = [2, 384], strides = [1, 1]} : vector<16x384xf32> to vector<2x384xf32>
    %356 = arith.truncf %354 : vector<2x128xf32> to vector<2x128xbf16>
    %cst_240 = arith.constant dense<0.000000e+00> : vector<2x384xf32>
    %357 = tpu.matmul %356, %166, %cst_240 {dimension_numbers = #tpu.dot_dimension_numbers<[1], [0], [0], [1], [0, 0, 1, 1], [], []>} : vector<2x128xbf16>, vector<128x384xbf16>, vector<2x384xf32> -> vector<2x384xf32>
    %358 = vector.extract_strided_slice %355 {offsets = [0, 0], sizes = [2, 128], strides = [1, 1]} : vector<2x384xf32> to vector<2x128xf32>
    %359 = vector.extract_strided_slice %357 {offsets = [0, 0], sizes = [2, 128], strides = [1, 1]} : vector<2x384xf32> to vector<2x128xf32>
    %360 = arith.addf %358, %359 : vector<2x128xf32>
    %361 = arith.negf %360 : vector<2x128xf32>
    %362 = math.exp %361 : vector<2x128xf32>
    %cst_241 = arith.constant 1.000000e+00 : f32
    %363 = vector.broadcast %cst_241 : f32 to vector<2x128xf32>
    %364 = arith.addf %363, %362 : vector<2x128xf32>
    %365 = arith.divf %363, %364 : vector<2x128xf32>
    %366 = vector.extract_strided_slice %355 {offsets = [0, 128], sizes = [2, 128], strides = [1, 1]} : vector<2x384xf32> to vector<2x128xf32>
    %367 = vector.extract_strided_slice %357 {offsets = [0, 128], sizes = [2, 128], strides = [1, 1]} : vector<2x384xf32> to vector<2x128xf32>
    %368 = arith.addf %366, %367 : vector<2x128xf32>
    %369 = arith.negf %368 : vector<2x128xf32>
    %370 = math.exp %369 : vector<2x128xf32>
    %cst_242 = arith.constant 1.000000e+00 : f32
    %371 = vector.broadcast %cst_242 : f32 to vector<2x128xf32>
    %372 = arith.addf %371, %370 : vector<2x128xf32>
    %373 = arith.divf %371, %372 : vector<2x128xf32>
    %374 = vector.extract_strided_slice %355 {offsets = [0, 256], sizes = [2, 128], strides = [1, 1]} : vector<2x384xf32> to vector<2x128xf32>
    %375 = vector.extract_strided_slice %357 {offsets = [0, 256], sizes = [2, 128], strides = [1, 1]} : vector<2x384xf32> to vector<2x128xf32>
    %376 = vector.broadcast %167 : vector<1x128xf32> to vector<2x128xf32>
    %377 = arith.addf %375, %376 : vector<2x128xf32>
    %378 = arith.mulf %365, %377 : vector<2x128xf32>
    %379 = arith.addf %374, %378 : vector<2x128xf32>
    %380 = math.tanh %379 : vector<2x128xf32>
    %cst_243 = arith.constant 1.000000e+00 : f32
    %381 = vector.broadcast %cst_243 : f32 to vector<2x128xf32>
    %382 = arith.subf %381, %373 : vector<2x128xf32>
    %383 = arith.mulf %382, %380 : vector<2x128xf32>
    %384 = arith.mulf %373, %354 : vector<2x128xf32>
    %385 = arith.addf %383, %384 : vector<2x128xf32>
    %386 = vector.extract_strided_slice %165 {offsets = [14, 0], sizes = [2, 384], strides = [1, 1]} : vector<16x384xf32> to vector<2x384xf32>
    %387 = arith.truncf %385 : vector<2x128xf32> to vector<2x128xbf16>
    %cst_244 = arith.constant dense<0.000000e+00> : vector<2x384xf32>
    %388 = tpu.matmul %387, %166, %cst_244 {dimension_numbers = #tpu.dot_dimension_numbers<[1], [0], [0], [1], [0, 0, 1, 1], [], []>} : vector<2x128xbf16>, vector<128x384xbf16>, vector<2x384xf32> -> vector<2x384xf32>
    %389 = vector.extract_strided_slice %386 {offsets = [0, 0], sizes = [2, 128], strides = [1, 1]} : vector<2x384xf32> to vector<2x128xf32>
    %390 = vector.extract_strided_slice %388 {offsets = [0, 0], sizes = [2, 128], strides = [1, 1]} : vector<2x384xf32> to vector<2x128xf32>
    %391 = arith.addf %389, %390 : vector<2x128xf32>
    %392 = arith.negf %391 : vector<2x128xf32>
    %393 = math.exp %392 : vector<2x128xf32>
    %cst_245 = arith.constant 1.000000e+00 : f32
    %394 = vector.broadcast %cst_245 : f32 to vector<2x128xf32>
    %395 = arith.addf %394, %393 : vector<2x128xf32>
    %396 = arith.divf %394, %395 : vector<2x128xf32>
    %397 = vector.extract_strided_slice %386 {offsets = [0, 128], sizes = [2, 128], strides = [1, 1]} : vector<2x384xf32> to vector<2x128xf32>
    %398 = vector.extract_strided_slice %388 {offsets = [0, 128], sizes = [2, 128], strides = [1, 1]} : vector<2x384xf32> to vector<2x128xf32>
    %399 = arith.addf %397, %398 : vector<2x128xf32>
    %400 = arith.negf %399 : vector<2x128xf32>
    %401 = math.exp %400 : vector<2x128xf32>
    %cst_246 = arith.constant 1.000000e+00 : f32
    %402 = vector.broadcast %cst_246 : f32 to vector<2x128xf32>
    %403 = arith.addf %402, %401 : vector<2x128xf32>
    %404 = arith.divf %402, %403 : vector<2x128xf32>
    %405 = vector.extract_strided_slice %386 {offsets = [0, 256], sizes = [2, 128], strides = [1, 1]} : vector<2x384xf32> to vector<2x128xf32>
    %406 = vector.extract_strided_slice %388 {offsets = [0, 256], sizes = [2, 128], strides = [1, 1]} : vector<2x384xf32> to vector<2x128xf32>
    %407 = vector.broadcast %167 : vector<1x128xf32> to vector<2x128xf32>
    %408 = arith.addf %406, %407 : vector<2x128xf32>
    %409 = arith.mulf %396, %408 : vector<2x128xf32>
    %410 = arith.addf %405, %409 : vector<2x128xf32>
    %411 = math.tanh %410 : vector<2x128xf32>
    %cst_247 = arith.constant 1.000000e+00 : f32
    %412 = vector.broadcast %cst_247 : f32 to vector<2x128xf32>
    %413 = arith.subf %412, %404 : vector<2x128xf32>
    %414 = arith.mulf %413, %411 : vector<2x128xf32>
    %415 = arith.mulf %404, %385 : vector<2x128xf32>
    %416 = arith.addf %414, %415 : vector<2x128xf32>
    %c0_248 = arith.constant 0 : index
    %c0_249 = arith.constant 0 : index
    %417 = vector.load %arg8[%c0_248, %c0_249] : memref<128x2xf32, #tpu.memory_space<vmem>>, vector<128x2xf32>
    %cst_250 = arith.constant dense<0.000000e+00> : vector<2x2xf32>
    %418 = tpu.matmul %416, %417, %cst_250 {dimension_numbers = #tpu.dot_dimension_numbers<[1], [0], [0], [1], [0, 0, 1, 1], [], []>} : vector<2x128xf32>, vector<128x2xf32>, vector<2x2xf32> -> vector<2x2xf32>
    %c0_251 = arith.constant 0 : index
    %c0_252 = arith.constant 0 : index
    %419 = vector.load %arg9[%c0_251, %c0_252] : memref<1x2xf32, #tpu.memory_space<vmem>>, vector<1x2xf32>
    %420 = vector.broadcast %419 : vector<1x2xf32> to vector<2x2xf32>
    %421 = arith.addf %418, %420 : vector<2x2xf32>
    %c0_253 = arith.constant 0 : index
    %c0_254 = arith.constant 0 : index
    %422 = vector.load %arg10[%c0_253, %c0_254] : memref<2x2xf32, #tpu.memory_space<vmem>>, vector<2x2xf32>
    tpu.vector_store %arg10[%c0_253, %c0_254], %421 {strides = array<i32>} : memref<2x2xf32, #tpu.memory_space<vmem>>, vector<2x2xf32>,
    return
  }
}

</mosaic_0001>

<llo_original>
// kernel: text_dsm_forward.1
$region0: #{text_dsm_forward.1}
  #allocation0 [shape = 'u32[]', space=smem, size = 0x4, offset = 0x4, fixed_abs, tag = 'smem constant byte address 0x4 - core index']
  #allocation1 [shape = 'u32[72,128]{1,0:T(1,128)}', space=vmem, size = 0x9000, scoped, tag = 'internal scratch']
  #allocation2 [shape = 'f32[16,128]{1,0:T(8,128)}', space=vmem, size = 0x2000, scoped, tag = 'scratch operand']
  %s0 = inlined_call_operand.vmem [shape: s32[2,8], index: 0, kind: input, shape index: {}]
  %s1 = inlined_call_operand.vmem [shape: s32[2,8], index: 1, kind: input, shape index: {}]
  %s2 = inlined_call_operand.vmem [shape: f32[50,32], index: 2, kind: input, shape index: {}]
  %s3 = inlined_call_operand.vmem [shape: f32[60,32], index: 3, kind: input, shape index: {}]
  %s4 = inlined_call_operand.hbm [shape: f32[128,384], index: 4, kind: input, shape index: {}]
  %s5 = inlined_call_operand.vmem [shape: f32[1,384], index: 5, kind: input, shape index: {}]
  %s6 = inlined_call_operand.vmem [shape: bf16[128,384], index: 6, kind: input, shape index: {}]
  %s7 = inlined_call_operand.vmem [shape: f32[1,128], index: 7, kind: input, shape index: {}]
  %s8 = inlined_call_operand.vmem [shape: f32[128,2], index: 8, kind: input, shape index: {}]
  %s9 = inlined_call_operand.vmem [shape: f32[1,2], index: 9, kind: input, shape index: {}]
  %s10 = inlined_call_operand.hbm [shape: f32[2,2], index: 10, kind: output, shape index: {}]
  %s11 = sld [smem:[#allocation0]]
  $region62: #{text_dsm_forward.1} parent=0
    _
  %s13 = ssub.s32 1, %s11
  %s14 = scalar_select 0, %s13, %s11
  $region1: #{text_dsm_forward.1} parent=0
    #allocation3 [shape = 'u8[1024]{0}', space=smem, size = 0x400, scoped, tag = 'input window, operand 0, single buffered']
    #allocation4 [shape = 's32[1]{0}', space=sflag, size = 0x4, scoped, tag = 'scoped memory for text_dsm_forward.1']
    #allocation5 [shape = 's32[1]{0}', space=sflag, size = 0x4, scoped, tag = 'scoped memory for text_dsm_forward.1']
    #allocation6 [shape = 's32[1]{0}', space=sflag, size = 0x4, scoped, tag = 'scoped memory for text_dsm_forward.1']
    #allocation7 [shape = 'u8[1024]{0}', space=smem, size = 0x400, scoped, tag = 'input window, operand 1, single buffered']
    #allocation8 [shape = 's32[1]{0}', space=sflag, size = 0x4, scoped, tag = 'scoped memory for text_dsm_forward.1']
    #allocation9 [shape = 'u8[196608]{0}', space=vmem, size = 0x30000, scoped, tag = 'input window, operand 4, single buffered']
    #allocation10 [shape = 'u8[1024]{0}', space=vmem, size = 0x400, scoped, tag = 'output window, operand 0, single buffered']
    %15 = vsyncpa [#allocation6], 0
    %16 = vsyncpa [#allocation8], 0
    %17 = vsyncpa [#allocation4], 0
    %18 = vsyncpa [#allocation5], 0
    // Predicated region
    $region2: #{text_dsm_forward.1} parent=1 // pred_check
      _
    $region3: #{text_dsm_forward.1} parent=1 // pred_check_branch
      %20 = sbr.rel (0) target = $region5
    $region4: #{text_dsm_forward.1} parent=1 // pred_region
      %22 = vsyncadd [#allocation6], 0
      %s24 = sshll.u32 %s0, 4
      %s25 = int_to_ptr.vmem [resolvable:$true] %s24
      %27 = dma.vmem_to_smem %s25, 32, [#allocation3], [#allocation6]
    $region5: #{text_dsm_forward.1} parent=1 // pred_fallthru
      _
    // Predicated region
    $region6: #{text_dsm_forward.1} parent=1 // pred_check
      _
    $region7: #{text_dsm_forward.1} parent=1 // pred_check_branch
      %29 = sbr.rel (0) target = $region9
    $region8: #{text_dsm_forward.1} parent=1 // pred_region
      %31 = vsyncadd [#allocation8], 0
      %s33 = sshll.u32 %s1, 4
      %s34 = int_to_ptr.vmem [resolvable:$true] %s33
      %36 = dma.vmem_to_smem %s34, 32, [#allocation7], [#allocation8]
    $region9: #{text_dsm_forward.1} parent=1 // pred_fallthru
      _
    // Predicated region
    $region10: #{text_dsm_forward.1} parent=1 // pred_check
      _
    $region11: #{text_dsm_forward.1} parent=1 // pred_check_branch
      %38 = sbr.rel (0) target = $region13
    $region12: #{text_dsm_forward.1} parent=1 // pred_region
      _
    $region13: #{text_dsm_forward.1} parent=1 // pred_fallthru
      _
    // Predicated region
    $region14: #{text_dsm_forward.1} parent=1 // pred_check
      _
    $region15: #{text_dsm_forward.1} parent=1 // pred_check_branch
      %40 = sbr.rel (0) target = $region17
    $region16: #{text_dsm_forward.1} parent=1 // pred_region
      _
    $region17: #{text_dsm_forward.1} parent=1 // pred_fallthru
      _
    // Predicated region
    $region18: #{text_dsm_forward.1} parent=1 // pred_check
      _
    $region19: #{text_dsm_forward.1} parent=1 // pred_check_branch
      %42 = sbr.rel (0) target = $region21
    $region20: #{text_dsm_forward.1} parent=1 // pred_region
      %44 = vsyncadd [#allocation4], 0
      %s45 = sshll.u32 %s4, 4
      %s46 = int_to_ptr.hbm [resolvable:$true] %s45
      %s47 = sshll.u32 [#allocation9], 4
      %s48 = int_to_ptr.vmem [resolvable:$true] %s47
      %53 = dma.hbm_to_vmem [thread:$0]  %s46, 6144, %s48, [#allocation4], 384, 384, 24
    $region21: #{text_dsm_forward.1} parent=1 // pred_fallthru
      _
    // Predicated region
    $region22: #{text_dsm_forward.1} parent=1 // pred_check
      _
    $region23: #{text_dsm_forward.1} parent=1 // pred_check_branch
      %55 = sbr.rel (0) target = $region25
    $region24: #{text_dsm_forward.1} parent=1 // pred_region
      _
    $region25: #{text_dsm_forward.1} parent=1 // pred_fallthru
      _
    // Predicated region
    $region26: #{text_dsm_forward.1} parent=1 // pred_check
      _
    $region27: #{text_dsm_forward.1} parent=1 // pred_check_branch
      %57 = sbr.rel (0) target = $region29
    $region28: #{text_dsm_forward.1} parent=1 // pred_region
      _
    $region29: #{text_dsm_forward.1} parent=1 // pred_fallthru
      _
    // Predicated region
    $region30: #{text_dsm_forward.1} parent=1 // pred_check
      _
    $region31: #{text_dsm_forward.1} parent=1 // pred_check_branch
      %59 = sbr.rel (0) target = $region33
    $region32: #{text_dsm_forward.1} parent=1 // pred_region
      _
    $region33: #{text_dsm_forward.1} parent=1 // pred_fallthru
      _
    // Predicated region
    $region34: #{text_dsm_forward.1} parent=1 // pred_check
      _
    $region35: #{text_dsm_forward.1} parent=1 // pred_check_branch
      %61 = sbr.rel (0) target = $region37
    $region36: #{text_dsm_forward.1} parent=1 // pred_region
      _
    $region37: #{text_dsm_forward.1} parent=1 // pred_fallthru
      _
    // Predicated region
    $region38: #{text_dsm_forward.1} parent=1 // pred_check
      _
    $region39: #{text_dsm_forward.1} parent=1 // pred_check_branch
      %63 = sbr.rel (0) target = $region41
    $region40: #{text_dsm_forward.1} parent=1 // pred_region
      _
    $region41: #{text_dsm_forward.1} parent=1 // pred_fallthru
      _
    // Predicated region
    $region42: #{text_dsm_forward.1} parent=1 // pred_check
      _
    $region43: #{text_dsm_forward.1} parent=1 // pred_check_branch
      %65 = sbr.rel (0) target = $region45
    $region44: #{text_dsm_forward.1} parent=1 // pred_region
      %67 = dma.done [#allocation6], 32
    $region45: #{text_dsm_forward.1} parent=1 // pred_fallthru
      _
    // Predicated region
    $region46: #{text_dsm_forward.1} parent=1 // pred_check
      _
    $region47: #{text_dsm_forward.1} parent=1 // pred_check_branch
      %69 = sbr.rel (0) target = $region49
    $region48: #{text_dsm_forward.1} parent=1 // pred_region
      %71 = dma.done [#allocation8], 32
    $region49: #{text_dsm_forward.1} parent=1 // pred_fallthru
      _
    // Predicated region
    $region50: #{text_dsm_forward.1} parent=1 // pred_check
      _
    $region51: #{text_dsm_forward.1} parent=1 // pred_check_branch
      %73 = sbr.rel (0) target = $region53
    $region52: #{text_dsm_forward.1} parent=1 // pred_region
      %75 = dma.done [#allocation4], 6144
    $region53: #{text_dsm_forward.1} parent=1 // pred_fallthru
      _
    %76 = sfence
    %s78 = sld [smem:[#allocation3]]
    %s79 = sld [smem:[#allocation7]]
    %s80 = scalar_lea.vmem %s2, %s78
    %v81 = vld [vmem:[%s80] sm:$0x1]
    %s82 = scalar_lea.vmem %s3, %s79
    %v83 = vld [vmem:[%s82] sm:$0x1]
    %vm84 = vcmask 253952
    %85 = vst.msk [vmem:[#allocation2] sm:$0x1] %vm84, %v81
    %87 = vrot.lane.b32.xlu0 %v81, 32
    %v88 = vpop.permute.xlu0 %87
    %vm90 = vcmask 516352
    %91 = vst.msk [vmem:[#allocation2 + $0xe] sm:$0x1] %vm90, %v88
    %93 = vrot.lane.b32.xlu0 %v83, 64
    %v94 = vpop.permute.xlu0 %93
    %vm96 = vcmask 778752
    %97 = vst.msk [vmem:[#allocation2] sm:$0x1] %vm96, %v94
    %98 = vrot.lane.b32.xlu0 %v83, 96
    %v99 = vpop.permute.xlu0 %98
    %vm101 = vcmask 1041152
    %102 = vst.msk [vmem:[#allocation2 + $0xe] sm:$0x1] %vm101, %v99
    %s103 = sld [smem:[#allocation3 + $0x80]]
    %s104 = sld [smem:[#allocation7 + $0x80]]
    %s105 = scalar_lea.vmem %s2, %s103
    %v106 = vld [vmem:[%s105] sm:$0x1]
    %s107 = scalar_lea.vmem %s3, %s104
    %v108 = vld [vmem:[%s107] sm:$0x1]
    %109 = vst.msk [vmem:[#allocation2 + $0x1] sm:$0x1] %vm84, %v106
    %111 = vrot.lane.b32.xlu0 %v106, 32
    %v112 = vpop.permute.xlu0 %111
    %114 = vst.msk [vmem:[#allocation2 + $0xf] sm:$0x1] %vm90, %v112
    %116 = vrot.lane.b32.xlu0 %v108, 64
    %v117 = vpop.permute.xlu0 %116
    %119 = vst.msk [vmem:[#allocation2 + $0x1] sm:$0x1] %vm96, %v117
    %120 = vrot.lane.b32.xlu0 %v108, 96
    %v121 = vpop.permute.xlu0 %120
    %123 = vst.msk [vmem:[#allocation2 + $0xf] sm:$0x1] %vm101, %v121
    %s124 = sld [smem:[#allocation3 + $0x1]]
    %s125 = sld [smem:[#allocation7 + $0x1]]
    %s126 = scalar_lea.vmem %s2, %s124
    %v127 = vld [vmem:[%s126] sm:$0x1]
    %s128 = scalar_lea.vmem %s3, %s125
    %v129 = vld [vmem:[%s128] sm:$0x1]
    %130 = vst.msk [vmem:[#allocation2 + $0x2] sm:$0x1] %vm84, %v127
    %132 = vrot.lane.b32.xlu0 %v127, 32
    %v133 = vpop.permute.xlu0 %132
    %135 = vst.msk [vmem:[#allocation2 + $0xc] sm:$0x1] %vm90, %v133
    %137 = vrot.lane.b32.xlu0 %v129, 64
    %v138 = vpop.permute.xlu0 %137
    %140 = vst.msk [vmem:[#allocation2 + $0x2] sm:$0x1] %vm96, %v138
    %141 = vrot.lane.b32.xlu0 %v129, 96
    %v142 = vpop.permute.xlu0 %141
    %144 = vst.msk [vmem:[#allocation2 + $0xc] sm:$0x1] %vm101, %v142
    %s145 = sld [smem:[#allocation3 + $0x81]]
    %s146 = sld [smem:[#allocation7 + $0x81]]
    %s147 = scalar_lea.vmem %s2, %s145
    %v148 = vld [vmem:[%s147] sm:$0x1]
    %s149 = scalar_lea.vmem %s3, %s146
    %v150 = vld [vmem:[%s149] sm:$0x1]
    %151 = vst.msk [vmem:[#allocation2 + $0x3] sm:$0x1] %vm84, %v148
    %153 = vrot.lane.b32.xlu0 %v148, 32
    %v154 = vpop.permute.xlu0 %153
    %156 = vst.msk [vmem:[#allocation2 + $0xd] sm:$0x1] %vm90, %v154
    %158 = vrot.lane.b32.xlu0 %v150, 64
    %v159 = vpop.permute.xlu0 %158
    %161 = vst.msk [vmem:[#allocation2 + $0x3] sm:$0x1] %vm96, %v159
    %162 = vrot.lane.b32.xlu0 %v150, 96
    %v163 = vpop.permute.xlu0 %162
    %165 = vst.msk [vmem:[#allocation2 + $0xd] sm:$0x1] %vm101, %v163
    %s166 = sld [smem:[#allocation3 + $0x2]]
    %s167 = sld [smem:[#allocation7 + $0x2]]
    %s168 = scalar_lea.vmem %s2, %s166
    %v169 = vld [vmem:[%s168] sm:$0x1]
    %s170 = scalar_lea.vmem %s3, %s167
    %v171 = vld [vmem:[%s170] sm:$0x1]
    %172 = vst.msk [vmem:[#allocation2 + $0x4] sm:$0x1] %vm84, %v169
    %174 = vrot.lane.b32.xlu0 %v169, 32
    %v175 = vpop.permute.xlu0 %174
    %177 = vst.msk [vmem:[#allocation2 + $0xa] sm:$0x1] %vm90, %v175
    %179 = vrot.lane.b32.xlu0 %v171, 64
    %v180 = vpop.permute.xlu0 %179
    %182 = vst.msk [vmem:[#allocation2 + $0x4] sm:$0x1] %vm96, %v180
    %183 = vrot.lane.b32.xlu0 %v171, 96
    %v184 = vpop.permute.xlu0 %183
    %186 = vst.msk [vmem:[#allocation2 + $0xa] sm:$0x1] %vm101, %v184
    %s187 = sld [smem:[#allocation3 + $0x82]]
    %s188 = sld [smem:[#allocation7 + $0x82]]
    %s189 = scalar_lea.vmem %s2, %s187
    %v190 = vld [vmem:[%s189] sm:$0x1]
    %s191 = scalar_lea.vmem %s3, %s188
    %v192 = vld [vmem:[%s191] sm:$0x1]
    %193 = vst.msk [vmem:[#allocation2 + $0x5] sm:$0x1] %vm84, %v190
    %195 = vrot.lane.b32.xlu0 %v190, 32
    %v196 = vpop.permute.xlu0 %195
    %198 = vst.msk [vmem:[#allocation2 + $0xb] sm:$0x1] %vm90, %v196
    %200 = vrot.lane.b32.xlu0 %v192, 64
    %v201 = vpop.permute.xlu0 %200
    %203 = vst.msk [vmem:[#allocation2 + $0x5] sm:$0x1] %vm96, %v201
    %204 = vrot.lane.b32.xlu0 %v192, 96
    %v205 = vpop.permute.xlu0 %204
    %207 = vst.msk [vmem:[#allocation2 + $0xb] sm:$0x1] %vm101, %v205
    %s208 = sld [smem:[#allocation3 + $0x3]]
    %s209 = sld [smem:[#allocation7 + $0x3]]
    %s210 = scalar_lea.vmem %s2, %s208
    %v211 = vld [vmem:[%s210] sm:$0x1]
    %s212 = scalar_lea.vmem %s3, %s209
    %v213 = vld [vmem:[%s212] sm:$0x1]
    %214 = vst.msk [vmem:[#allocation2 + $0x6] sm:$0x1] %vm84, %v211
    %216 = vrot.lane.b32.xlu0 %v211, 32
    %v217 = vpop.permute.xlu0 %216
    %219 = vst.msk [vmem:[#allocation2 + $0x8] sm:$0x1] %vm90, %v217
    %221 = vrot.lane.b32.xlu0 %v213, 64
    %v222 = vpop.permute.xlu0 %221
    %224 = vst.msk [vmem:[#allocation2 + $0x6] sm:$0x1] %vm96, %v222
    %225 = vrot.lane.b32.xlu0 %v213, 96
    %v226 = vpop.permute.xlu0 %225
    %228 = vst.msk [vmem:[#allocation2 + $0x8] sm:$0x1] %vm101, %v226
    %s229 = sld [smem:[#allocation3 + $0x83]]
    %s230 = sld [smem:[#allocation7 + $0x83]]
    %s231 = scalar_lea.vmem %s2, %s229
    %v232 = vld [vmem:[%s231] sm:$0x1]
    %s233 = scalar_lea.vmem %s3, %s230
    %v234 = vld [vmem:[%s233] sm:$0x1]
    %235 = vst.msk [vmem:[#allocation2 + $0x7] sm:$0x1] %vm84, %v232
    %237 = vrot.lane.b32.xlu0 %v232, 32
    %v238 = vpop.permute.xlu0 %237
    %240 = vst.msk [vmem:[#allocation2 + $0x9] sm:$0x1] %vm90, %v238
    %242 = vrot.lane.b32.xlu0 %v234, 64
    %v243 = vpop.permute.xlu0 %242
    %245 = vst.msk [vmem:[#allocation2 + $0x7] sm:$0x1] %vm96, %v243
    %246 = vrot.lane.b32.xlu0 %v234, 96
    %v247 = vpop.permute.xlu0 %246
    %249 = vst.msk [vmem:[#allocation2 + $0x9] sm:$0x1] %vm101, %v247
    %s250 = sld [smem:[#allocation3 + $0x4]]
    %s251 = sld [smem:[#allocation7 + $0x4]]
    %s252 = scalar_lea.vmem %s2, %s250
    %v253 = vld [vmem:[%s252] sm:$0x1]
    %s254 = scalar_lea.vmem %s3, %s251
    %v255 = vld [vmem:[%s254] sm:$0x1]
    %256 = vst.msk [vmem:[#allocation2 + $0x8] sm:$0x1] %vm84, %v253
    %258 = vrot.lane.b32.xlu0 %v253, 32
    %v259 = vpop.permute.xlu0 %258
    %261 = vst.msk [vmem:[#allocation2 + $0x6] sm:$0x1] %vm90, %v259
    %263 = vrot.lane.b32.xlu0 %v255, 64
    %v264 = vpop.permute.xlu0 %263
    %266 = vst.msk [vmem:[#allocation2 + $0x8] sm:$0x1] %vm96, %v264
    %267 = vrot.lane.b32.xlu0 %v255, 96
    %v268 = vpop.permute.xlu0 %267
    %270 = vst.msk [vmem:[#allocation2 + $0x6] sm:$0x1] %vm101, %v268
    %s271 = sld [smem:[#allocation3 + $0x84]]
    %s272 = sld [smem:[#allocation7 + $0x84]]
    %s273 = scalar_lea.vmem %s2, %s271
    %v274 = vld [vmem:[%s273] sm:$0x1]
    %s275 = scalar_lea.vmem %s3, %s272
    %v276 = vld [vmem:[%s275] sm:$0x1]
    %277 = vst.msk [vmem:[#allocation2 + $0x9] sm:$0x1] %vm84, %v274
    %279 = vrot.lane.b32.xlu0 %v274, 32
    %v280 = vpop.permute.xlu0 %279
    %282 = vst.msk [vmem:[#allocation2 + $0x7] sm:$0x1] %vm90, %v280
    %284 = vrot.lane.b32.xlu0 %v276, 64
    %v285 = vpop.permute.xlu0 %284
    %287 = vst.msk [vmem:[#allocation2 + $0x9] sm:$0x1] %vm96, %v285
    %288 = vrot.lane.b32.xlu0 %v276, 96
    %v289 = vpop.permute.xlu0 %288
    %291 = vst.msk [vmem:[#allocation2 + $0x7] sm:$0x1] %vm101, %v289
    %s292 = sld [smem:[#allocation3 + $0x5]]
    %s293 = sld [smem:[#allocation7 + $0x5]]
    %s294 = scalar_lea.vmem %s2, %s292
    %v295 = vld [vmem:[%s294] sm:$0x1]
    %s296 = scalar_lea.vmem %s3, %s293
    %v297 = vld [vmem:[%s296] sm:$0x1]
    %298 = vst.msk [vmem:[#allocation2 + $0xa] sm:$0x1] %vm84, %v295
    %300 = vrot.lane.b32.xlu0 %v295, 32
    %v301 = vpop.permute.xlu0 %300
    %303 = vst.msk [vmem:[#allocation2 + $0x4] sm:$0x1] %vm90, %v301
    %305 = vrot.lane.b32.xlu0 %v297, 64
    %v306 = vpop.permute.xlu0 %305
    %308 = vst.msk [vmem:[#allocation2 + $0xa] sm:$0x1] %vm96, %v306
    %309 = vrot.lane.b32.xlu0 %v297, 96
    %v310 = vpop.permute.xlu0 %309
    %312 = vst.msk [vmem:[#allocation2 + $0x4] sm:$0x1] %vm101, %v310
    %s313 = sld [smem:[#allocation3 + $0x85]]
    %s314 = sld [smem:[#allocation7 + $0x85]]
    %s315 = scalar_lea.vmem %s2, %s313
    %v316 = vld [vmem:[%s315] sm:$0x1]
    %s317 = scalar_lea.vmem %s3, %s314
    %v318 = vld [vmem:[%s317] sm:$0x1]
    %319 = vst.msk [vmem:[#allocation2 + $0xb] sm:$0x1] %vm84, %v316
    %321 = vrot.lane.b32.xlu0 %v316, 32
    %v322 = vpop.permute.xlu0 %321
    %324 = vst.msk [vmem:[#allocation2 + $0x5] sm:$0x1] %vm90, %v322
    %326 = vrot.lane.b32.xlu0 %v318, 64
    %v327 = vpop.permute.xlu0 %326
    %329 = vst.msk [vmem:[#allocation2 + $0xb] sm:$0x1] %vm96, %v327
    %330 = vrot.lane.b32.xlu0 %v318, 96
    %v331 = vpop.permute.xlu0 %330
    %333 = vst.msk [vmem:[#allocation2 + $0x5] sm:$0x1] %vm101, %v331
    %s334 = sld [smem:[#allocation3 + $0x6]]
    %s335 = sld [smem:[#allocation7 + $0x6]]
    %s336 = scalar_lea.vmem %s2, %s334
    %v337 = vld [vmem:[%s336] sm:$0x1]
    %s338 = scalar_lea.vmem %s3, %s335
    %v339 = vld [vmem:[%s338] sm:$0x1]
    %340 = vst.msk [vmem:[#allocation2 + $0xc] sm:$0x1] %vm84, %v337
    %342 = vrot.lane.b32.xlu0 %v337, 32
    %v343 = vpop.permute.xlu0 %342
    %345 = vst.msk [vmem:[#allocation2 + $0x2] sm:$0x1] %vm90, %v343
    %347 = vrot.lane.b32.xlu0 %v339, 64
    %v348 = vpop.permute.xlu0 %347
    %350 = vst.msk [vmem:[#allocation2 + $0xc] sm:$0x1] %vm96, %v348
    %351 = vrot.lane.b32.xlu0 %v339, 96
    %v352 = vpop.permute.xlu0 %351
    %354 = vst.msk [vmem:[#allocation2 + $0x2] sm:$0x1] %vm101, %v352
    %s355 = sld [smem:[#allocation3 + $0x86]]
    %s356 = sld [smem:[#allocation7 + $0x86]]
    %s357 = scalar_lea.vmem %s2, %s355
    %v358 = vld [vmem:[%s357] sm:$0x1]
    %s359 = scalar_lea.vmem %s3, %s356
    %v360 = vld [vmem:[%s359] sm:$0x1]
    %361 = vst.msk [vmem:[#allocation2 + $0xd] sm:$0x1] %vm84, %v358
    %363 = vrot.lane.b32.xlu0 %v358, 32
    %v364 = vpop.permute.xlu0 %363
    %366 = vst.msk [vmem:[#allocation2 + $0x3] sm:$0x1] %vm90, %v364
    %368 = vrot.lane.b32.xlu0 %v360, 64
    %v369 = vpop.permute.xlu0 %368
    %371 = vst.msk [vmem:[#allocation2 + $0xd] sm:$0x1] %vm96, %v369
    %372 = vrot.lane.b32.xlu0 %v360, 96
    %v373 = vpop.permute.xlu0 %372
    %375 = vst.msk [vmem:[#allocation2 + $0x3] sm:$0x1] %vm101, %v373
    %s376 = sld [smem:[#allocation3 + $0x7]]
    %s377 = sld [smem:[#allocation7 + $0x7]]
    %s378 = scalar_lea.vmem %s2, %s376
    %v379 = vld [vmem:[%s378] sm:$0x1]
    %s380 = scalar_lea.vmem %s3, %s377
    %v381 = vld [vmem:[%s380] sm:$0x1]
    %382 = vst.msk [vmem:[#allocation2 + $0xe] sm:$0x1] %vm84, %v379
    %384 = vrot.lane.b32.xlu0 %v379, 32
    %v385 = vpop.permute.xlu0 %384
    %387 = vst.msk [vmem:[#allocation2] sm:$0x1] %vm90, %v385
    %389 = vrot.lane.b32.xlu0 %v381, 64
    %v390 = vpop.permute.xlu0 %389
    %392 = vst.msk [vmem:[#allocation2 + $0xe] sm:$0x1] %vm96, %v390
    %393 = vrot.lane.b32.xlu0 %v381, 96
    %v394 = vpop.permute.xlu0 %393
    %396 = vst.msk [vmem:[#allocation2] sm:$0x1] %vm101, %v394
    %s397 = sld [smem:[#allocation3 + $0x87]]
    %s398 = sld [smem:[#allocation7 + $0x87]]
    %s399 = scalar_lea.vmem %s2, %s397
    %v400 = vld [vmem:[%s399] sm:$0x1]
    %s401 = scalar_lea.vmem %s3, %s398
    %v402 = vld [vmem:[%s401] sm:$0x1]
    %403 = vst.msk [vmem:[#allocation2 + $0xf] sm:$0x1] %vm84, %v400
    %405 = vrot.lane.b32.xlu0 %v400, 32
    %v406 = vpop.permute.xlu0 %405
    %408 = vst.msk [vmem:[#allocation2 + $0x1] sm:$0x1] %vm90, %v406
    %410 = vrot.lane.b32.xlu0 %v402, 64
    %v411 = vpop.permute.xlu0 %410
    %413 = vst.msk [vmem:[#allocation2 + $0xf] sm:$0x1] %vm96, %v411
    %414 = vrot.lane.b32.xlu0 %v402, 96
    %v415 = vpop.permute.xlu0 %414
    %417 = vst.msk [vmem:[#allocation2 + $0x1] sm:$0x1] %vm101, %v415
    %v418 = vld [vmem:[#allocation2] sm:$0xff]
    %v419 = vld [vmem:[#allocation2 + $0x8] sm:$0xff]
    %v420 = vld [vmem:[#allocation9] sm:$0xff]
    %v421 = vld [vmem:[#allocation9 + $0x8] sm:$0xff]
    %v422 = vld [vmem:[#allocation9 + $0x10] sm:$0xff]
    %v423 = vld [vmem:[#allocation9 + $0x18] sm:$0xff]
    %v424 = vld [vmem:[#allocation9 + $0x20] sm:$0xff]
    %v425 = vld [vmem:[#allocation9 + $0x28] sm:$0xff]
    %v426 = vld [vmem:[#allocation9 + $0x30] sm:$0xff]
    %v427 = vld [vmem:[#allocation9 + $0x38] sm:$0xff]
    %v428 = vld [vmem:[#allocation9 + $0x40] sm:$0xff]
    %v429 = vld [vmem:[#allocation9 + $0x48] sm:$0xff]
    %v430 = vld [vmem:[#allocation9 + $0x50] sm:$0xff]
    %v431 = vld [vmem:[#allocation9 + $0x58] sm:$0xff]
    %v432 = vld [vmem:[#allocation9 + $0x60] sm:$0xff]
    %v433 = vld [vmem:[#allocation9 + $0x68] sm:$0xff]
    %v434 = vld [vmem:[#allocation9 + $0x70] sm:$0xff]
    %v435 = vld [vmem:[#allocation9 + $0x78] sm:$0xff]
    %v436 = vld [vmem:[#allocation9 + $0x80] sm:$0xff]
    %v437 = vld [vmem:[#allocation9 + $0x88] sm:$0xff]
    %v438 = vld [vmem:[#allocation9 + $0x90] sm:$0xff]
    %v439 = vld [vmem:[#allocation9 + $0x98] sm:$0xff]
    %v440 = vld [vmem:[#allocation9 + $0xa0] sm:$0xff]
    %v441 = vld [vmem:[#allocation9 + $0xa8] sm:$0xff]
    %v442 = vld [vmem:[#allocation9 + $0xb0] sm:$0xff]
    %v443 = vld [vmem:[#allocation9 + $0xb8] sm:$0xff]
    %v444 = vld [vmem:[#allocation9 + $0xc0] sm:$0xff]
    %v445 = vld [vmem:[#allocation9 + $0xc8] sm:$0xff]
    %v446 = vld [vmem:[#allocation9 + $0xd0] sm:$0xff]
    %v447 = vld [vmem:[#allocation9 + $0xd8] sm:$0xff]
    %v448 = vld [vmem:[#allocation9 + $0xe0] sm:$0xff]
    %v449 = vld [vmem:[#allocation9 + $0xe8] sm:$0xff]
    %v450 = vld [vmem:[#allocation9 + $0xf0] sm:$0xff]
    %v451 = vld [vmem:[#allocation9 + $0xf8] sm:$0xff]
    %v452 = vld [vmem:[#allocation9 + $0x100] sm:$0xff]
    %v453 = vld [vmem:[#allocation9 + $0x108] sm:$0xff]
    %v454 = vld [vmem:[#allocation9 + $0x110] sm:$0xff]
    %v455 = vld [vmem:[#allocation9 + $0x118] sm:$0xff]
    %v456 = vld [vmem:[#allocation9 + $0x120] sm:$0xff]
    %v457 = vld [vmem:[#allocation9 + $0x128] sm:$0xff]
    %v458 = vld [vmem:[#allocation9 + $0x130] sm:$0xff]
    %v459 = vld [vmem:[#allocation9 + $0x138] sm:$0xff]
    %v460 = vld [vmem:[#allocation9 + $0x140] sm:$0xff]
    %v461 = vld [vmem:[#allocation9 + $0x148] sm:$0xff]
    %v462 = vld [vmem:[#allocation9 + $0x150] sm:$0xff]
    %v463 = vld [vmem:[#allocation9 + $0x158] sm:$0xff]
    %v464 = vld [vmem:[#allocation9 + $0x160] sm:$0xff]
    %v465 = vld [vmem:[#allocation9 + $0x168] sm:$0xff]
    %v466 = vld [vmem:[#allocation9 + $0x170] sm:$0xff]
    %v467 = vld [vmem:[#allocation9 + $0x178] sm:$0xff]
    %v468 = vld [vmem:[%s5] sm:$0x7]
    %v470 = vperm.slane %v468, 0
    %v471 = vperm.slane %v468, 1
    %v472 = vperm.slane %v468, 2
    %476 = vmatpush.msra.mxu0 %v465
    %477 = vmatpush.msra.mxu0 %v462
    %478 = vmatpush.msra.mxu0 %v459
    %479 = vmatpush.msra.mxu0 %v456
    %480 = vmatpush.msra.mxu0 %v453
    %481 = vmatpush.msra.mxu0 %v450
    %482 = vmatpush.msra.mxu0 %v447
    %483 = vmatpush.msra.mxu0 %v444
    %484 = vmatpush.msra.mxu0 %v441
    %485 = vmatpush.msra.mxu0 %v438
    %486 = vmatpush.msra.mxu0 %v435
    %487 = vmatpush.msra.mxu0 %v432
    %488 = vmatpush.msra.mxu0 %v429
    %489 = vmatpush.msra.mxu0 %v426
    %490 = vmatpush.msra.mxu0 %v423
    %491 = vmatpush.msra.mxu0 %v420
    %492 = vmatmul.f32.gmra.mxu0 %v418
    %v493 = vpop.f32.mrf.mxu0
    %v494 = vadd.f32 %v470, %v493
    %495 = vmatmul.f32.gmra.mxu0 %v419
    %v496 = vpop.f32.mrf.mxu0
    %v497 = vadd.f32 %v470, %v496
    %498 = vdwg.mxu0
    %499 = vmatpush.msra.mxu0 %v466
    %500 = vmatpush.msra.mxu0 %v463
    %501 = vmatpush.msra.mxu0 %v460
    %502 = vmatpush.msra.mxu0 %v457
    %503 = vmatpush.msra.mxu0 %v454
    %504 = vmatpush.msra.mxu0 %v451
    %505 = vmatpush.msra.mxu0 %v448
    %506 = vmatpush.msra.mxu0 %v445
    %507 = vmatpush.msra.mxu0 %v442
    %508 = vmatpush.msra.mxu0 %v439
    %509 = vmatpush.msra.mxu0 %v436
    %510 = vmatpush.msra.mxu0 %v433
    %511 = vmatpush.msra.mxu0 %v430
    %512 = vmatpush.msra.mxu0 %v427
    %513 = vmatpush.msra.mxu0 %v424
    %514 = vmatpush.msra.mxu0 %v421
    %515 = vmatmul.f32.gmra.mxu0 %v418
    %v516 = vpop.f32.mrf.mxu0
    %v517 = vadd.f32 %v471, %v516
    %518 = vmatmul.f32.gmra.mxu0 %v419
    %v519 = vpop.f32.mrf.mxu0
    %v520 = vadd.f32 %v471, %v519
    %521 = vdwg.mxu0
    %522 = vmatpush.msra.mxu0 %v467
    %523 = vmatpush.msra.mxu0 %v464
    %524 = vmatpush.msra.mxu0 %v461
    %525 = vmatpush.msra.mxu0 %v458
    %526 = vmatpush.msra.mxu0 %v455
    %527 = vmatpush.msra.mxu0 %v452
    %528 = vmatpush.msra.mxu0 %v449
    %529 = vmatpush.msra.mxu0 %v446
    %530 = vmatpush.msra.mxu0 %v443
    %531 = vmatpush.msra.mxu0 %v440
    %532 = vmatpush.msra.mxu0 %v437
    %533 = vmatpush.msra.mxu0 %v434
    %534 = vmatpush.msra.mxu0 %v431
    %535 = vmatpush.msra.mxu0 %v428
    %536 = vmatpush.msra.mxu0 %v425
    %537 = vmatpush.msra.mxu0 %v422
    %538 = vmatmul.f32.gmra.mxu0 %v418
    %v539 = vpop.f32.mrf.mxu0
    %v540 = vadd.f32 %v472, %v539
    %541 = vmatmul.f32.gmra.mxu0 %v419
    %v542 = vpop.f32.mrf.mxu0
    %v543 = vadd.f32 %v472, %v542
    %544 = vdwg.mxu0
    %v545 = vld [vmem:[%s6] sm:$0xff]
    %v546 = vld [vmem:[%s6 + $0x8] sm:$0xf]
    %v547 = vld [vmem:[%s6 + $0xc] sm:$0xff]
    %v548 = vld [vmem:[%s6 + $0x14] sm:$0xf]
    %v549 = vld [vmem:[%s6 + $0x18] sm:$0xff]
    %v550 = vld [vmem:[%s6 + $0x20] sm:$0xf]
    %v551 = vld [vmem:[%s6 + $0x24] sm:$0xff]
    %v552 = vld [vmem:[%s6 + $0x2c] sm:$0xf]
    %v553 = vld [vmem:[%s6 + $0x30] sm:$0xff]
    %v554 = vld [vmem:[%s6 + $0x38] sm:$0xf]
    %v555 = vld [vmem:[%s6 + $0x3c] sm:$0xff]
    %v556 = vld [vmem:[%s6 + $0x44] sm:$0xf]
    %v557 = vld [vmem:[%s6 + $0x48] sm:$0xff]
    %v558 = vld [vmem:[%s6 + $0x50] sm:$0xf]
    %v559 = vld [vmem:[%s6 + $0x54] sm:$0xff]
    %v560 = vld [vmem:[%s6 + $0x5c] sm:$0xf]
    %v561 = vld [vmem:[%s6 + $0x60] sm:$0xff]
    %v562 = vld [vmem:[%s6 + $0x68] sm:$0xf]
    %v563 = vld [vmem:[%s6 + $0x6c] sm:$0xff]
    %v564 = vld [vmem:[%s6 + $0x74] sm:$0xf]
    %v565 = vld [vmem:[%s6 + $0x78] sm:$0xff]
    %v566 = vld [vmem:[%s6 + $0x80] sm:$0xf]
    %v567 = vld [vmem:[%s6 + $0x84] sm:$0xff]
    %v568 = vld [vmem:[%s6 + $0x8c] sm:$0xf]
    %v569 = vld [vmem:[%s6 + $0x90] sm:$0xff]
    %v570 = vld [vmem:[%s6 + $0x98] sm:$0xf]
    %v571 = vld [vmem:[%s6 + $0x9c] sm:$0xff]
    %v572 = vld [vmem:[%s6 + $0xa4] sm:$0xf]
    %v573 = vld [vmem:[%s6 + $0xa8] sm:$0xff]
    %v574 = vld [vmem:[%s6 + $0xb0] sm:$0xf]
    %v575 = vld [vmem:[%s6 + $0xb4] sm:$0xff]
    %v576 = vld [vmem:[%s6 + $0xbc] sm:$0xf]
    %v577 = vld [vmem:[%s7] sm:$0x1]
    %v610 = vunpack.c.l.b16 %v545
    %v611 = vunpack.c.h.b16 %v545
    %v612 = vunpack.c.l.b16 %v546
    %v613 = vunpack.c.l.b16 %v547
    %v614 = vunpack.c.h.b16 %v547
    %v615 = vunpack.c.l.b16 %v548
    %v616 = vunpack.c.l.b16 %v549
    %v617 = vunpack.c.h.b16 %v549
    %v618 = vunpack.c.l.b16 %v550
    %v619 = vunpack.c.l.b16 %v551
    %v620 = vunpack.c.h.b16 %v551
    %v621 = vunpack.c.l.b16 %v552
    %v622 = vunpack.c.l.b16 %v553
    %v623 = vunpack.c.h.b16 %v553
    %v624 = vunpack.c.l.b16 %v554
    %v625 = vunpack.c.l.b16 %v555
    %v626 = vunpack.c.h.b16 %v555
    %v627 = vunpack.c.l.b16 %v556
    %v628 = vunpack.c.l.b16 %v557
    %v629 = vunpack.c.h.b16 %v557
    %v630 = vunpack.c.l.b16 %v558
    %v631 = vunpack.c.l.b16 %v559
    %v632 = vunpack.c.h.b16 %v559
    %v633 = vunpack.c.l.b16 %v560
    %v634 = vunpack.c.l.b16 %v561
    %v635 = vunpack.c.h.b16 %v561
    %v636 = vunpack.c.l.b16 %v562
    %v637 = vunpack.c.l.b16 %v563
    %v638 = vunpack.c.h.b16 %v563
    %v639 = vunpack.c.l.b16 %v564
    %v640 = vunpack.c.l.b16 %v565
    %v641 = vunpack.c.h.b16 %v565
    %v642 = vunpack.c.l.b16 %v566
    %v643 = vunpack.c.l.b16 %v567
    %v644 = vunpack.c.h.b16 %v567
    %v645 = vunpack.c.l.b16 %v568
    %v646 = vunpack.c.l.b16 %v569
    %v647 = vunpack.c.h.b16 %v569
    %v648 = vunpack.c.l.b16 %v570
    %v649 = vunpack.c.l.b16 %v571
    %v650 = vunpack.c.h.b16 %v571
    %v651 = vunpack.c.l.b16 %v572
    %v652 = vunpack.c.l.b16 %v573
    %v653 = vunpack.c.h.b16 %v573
    %v654 = vunpack.c.l.b16 %v574
    %v655 = vunpack.c.l.b16 %v575
    %v656 = vunpack.c.h.b16 %v575
    %v657 = vunpack.c.l.b16 %v576
    %v658 = vpack.c.b16 %v613, %v610
    %v659 = vpack.c.b16 %v614, %v611
    %v660 = vpack.c.b16 %v615, %v612
    %v661 = vpack.c.b16 %v619, %v616
    %v662 = vpack.c.b16 %v620, %v617
    %v663 = vpack.c.b16 %v621, %v618
    %v664 = vpack.c.b16 %v625, %v622
    %v665 = vpack.c.b16 %v626, %v623
    %v666 = vpack.c.b16 %v627, %v624
    %v667 = vpack.c.b16 %v631, %v628
    %v668 = vpack.c.b16 %v632, %v629
    %v669 = vpack.c.b16 %v633, %v630
    %v670 = vpack.c.b16 %v637, %v634
    %v671 = vpack.c.b16 %v638, %v635
    %v672 = vpack.c.b16 %v639, %v636
    %v673 = vpack.c.b16 %v643, %v640
    %v674 = vpack.c.b16 %v644, %v641
    %v675 = vpack.c.b16 %v645, %v642
    %v676 = vpack.c.b16 %v649, %v646
    %v677 = vpack.c.b16 %v650, %v647
    %v678 = vpack.c.b16 %v651, %v648
    %v679 = vpack.c.b16 %v655, %v652
    %v680 = vpack.c.b16 %v656, %v653
    %v681 = vpack.c.b16 %v657, %v654
    %706 = vmatpush.bf16.msra.mxu0 %v679
    %707 = vmatpush.bf16.msra.mxu0 %v676
    %708 = vmatpush.bf16.msra.mxu0 %v673
    %709 = vmatpush.bf16.msra.mxu0 %v670
    %710 = vmatpush.bf16.msra.mxu0 %v667
    %711 = vmatpush.bf16.msra.mxu0 %v664
    %712 = vmatpush.bf16.msra.mxu0 %v661
    %713 = vmatpush.bf16.msra.mxu0 %v658
    %714 = vmatmul.bf16.gmra.mxu0 0
    %v715 = vpop.f32.mrf.mxu0
    %v716 = vadd.f32 0.0, %v715
    %v717 = vpop.f32.mrf.mxu0
    %718 = vdwg.mxu0
    %719 = vmatpush.bf16.msra.mxu0 %v680
    %720 = vmatpush.bf16.msra.mxu0 %v677
    %721 = vmatpush.bf16.msra.mxu0 %v674
    %722 = vmatpush.bf16.msra.mxu0 %v671
    %723 = vmatpush.bf16.msra.mxu0 %v668
    %724 = vmatpush.bf16.msra.mxu0 %v665
    %725 = vmatpush.bf16.msra.mxu0 %v662
    %726 = vmatpush.bf16.msra.mxu0 %v659
    %727 = vmatmul.bf16.gmra.mxu0 0
    %v728 = vpop.f32.mrf.mxu0
    %v729 = vadd.f32 0.0, %v728
    %v730 = vpop.f32.mrf.mxu0
    %731 = vdwg.mxu0
    %732 = vmatpush.bf16.msra.mxu0 %v681
    %733 = vmatpush.bf16.msra.mxu0 %v678
    %734 = vmatpush.bf16.msra.mxu0 %v675
    %735 = vmatpush.bf16.msra.mxu0 %v672
    %736 = vmatpush.bf16.msra.mxu0 %v669
    %737 = vmatpush.bf16.msra.mxu0 %v666
    %738 = vmatpush.bf16.msra.mxu0 %v663
    %739 = vmatpush.bf16.msra.mxu0 %v660
    %740 = vmatmul.bf16.gmra.mxu0 0
    %v741 = vpop.f32.mrf.mxu0
    %v742 = vadd.f32 0.0, %v741
    %v743 = vpop.f32.mrf.mxu0
    %744 = vdwg.mxu0
    %v745 = vadd.f32 %v494, %v716
    %v746 = vxor.u32 %v745, 2147483648
    %v747 = vmul.f32 %v746, 1.442695
    %v748 = vpow.pop %v747
    %v749 = vadd.f32 %v748, 1.0
    %v750 = vrcp.pop %v749
    %v751 = vmul.f32 %v749, %v750
    %v752 = vsub.f32 1.0, %v751
    %v753 = vmul.f32 %v750, %v752
    %v754 = vadd.f32 %v750, %v753
    %vm755 = vweird.f32 %v749
    %vm756 = vweird.f32 %v750
    %vm757 = vmor %vm755, %vm756
    %v758 = vsel %vm757, %v750, %v754
    %v759 = vand.u32 2147483647, %v749
    %vm760 = vcmp.eq.f32.partialorder %v759, 8.507059e+37
    %v761 = vand.u32 %v749, 2147483648
    %v762 = vor.u32 1.1754944e-38, %v761
    %v763 = vsel %vm760, %v762, %v758
    %v764 = vmul.f32 1.0, %v763
    %v765 = vadd.f32 %v517, %v729
    %v766 = vxor.u32 %v765, 2147483648
    %v767 = vmul.f32 %v766, 1.442695
    %v768 = vpow.pop %v767
    %v769 = vadd.f32 %v768, 1.0
    %v770 = vrcp.pop %v769
    %v771 = vmul.f32 %v769, %v770
    %v772 = vsub.f32 1.0, %v771
    %v773 = vmul.f32 %v770, %v772
    %v774 = vadd.f32 %v770, %v773
    %vm775 = vweird.f32 %v769
    %vm776 = vweird.f32 %v770
    %vm777 = vmor %vm775, %vm776
    %v778 = vsel %vm777, %v770, %v774
    %v779 = vand.u32 2147483647, %v769
    %vm780 = vcmp.eq.f32.partialorder %v779, 8.507059e+37
    %v781 = vand.u32 %v769, 2147483648
    %v782 = vor.u32 1.1754944e-38, %v781
    %v783 = vsel %vm780, %v782, %v778
    %v784 = vmul.f32 1.0, %v783
    %v786 = vperm.slane %v577, 0
    %v788 = vadd.f32 %v742, %v786
    %v789 = vmul.f32 %v764, %v788
    %v790 = vadd.f32 %v540, %v789
    %v791 = vtanh.pop %v790
    %v792 = vsub.f32 1.0, %v784
    %v793 = vmul.f32 %v792, %v791
    %v794 = vmul.f32 %v784, 0.0
    %v795 = vadd.f32 %v793, %v794
    %v796 = vpack.c.bf16 %v795, %v795
    %797 = vmatpush.bf16.msra.mxu0 %v679
    %798 = vmatpush.bf16.msra.mxu0 %v676
    %799 = vmatpush.bf16.msra.mxu0 %v673
    %800 = vmatpush.bf16.msra.mxu0 %v670
    %801 = vmatpush.bf16.msra.mxu0 %v667
    %802 = vmatpush.bf16.msra.mxu0 %v664
    %803 = vmatpush.bf16.msra.mxu0 %v661
    %804 = vmatpush.bf16.msra.mxu0 %v658
    %805 = vmatmul.bf16.gmra.mxu0 %v796
    %v806 = vpop.f32.mrf.mxu0
    %v807 = vadd.f32 0.0, %v806
    %v808 = vpop.f32.mrf.mxu0
    %809 = vdwg.mxu0
    %810 = vmatpush.bf16.msra.mxu0 %v680
    %811 = vmatpush.bf16.msra.mxu0 %v677
    %812 = vmatpush.bf16.msra.mxu0 %v674
    %813 = vmatpush.bf16.msra.mxu0 %v671
    %814 = vmatpush.bf16.msra.mxu0 %v668
    %815 = vmatpush.bf16.msra.mxu0 %v665
    %816 = vmatpush.bf16.msra.mxu0 %v662
    %817 = vmatpush.bf16.msra.mxu0 %v659
    %818 = vmatmul.bf16.gmra.mxu0 %v796
    %v819 = vpop.f32.mrf.mxu0
    %v820 = vadd.f32 0.0, %v819
    %v821 = vpop.f32.mrf.mxu0
    %822 = vdwg.mxu0
    %823 = vmatpush.bf16.msra.mxu0 %v681
    %824 = vmatpush.bf16.msra.mxu0 %v678
    %825 = vmatpush.bf16.msra.mxu0 %v675
    %826 = vmatpush.bf16.msra.mxu0 %v672
    %827 = vmatpush.bf16.msra.mxu0 %v669
    %828 = vmatpush.bf16.msra.mxu0 %v666
    %829 = vmatpush.bf16.msra.mxu0 %v663
    %830 = vmatpush.bf16.msra.mxu0 %v660
    %831 = vmatmul.bf16.gmra.mxu0 %v796
    %v832 = vpop.f32.mrf.mxu0
    %v833 = vadd.f32 0.0, %v832
    %v834 = vpop.f32.mrf.mxu0
    %835 = vdwg.mxu0
    %v837 = vrot.slane %v807, 6
    %v839 = vadd.f32 %v494, %v837
    %v840 = vxor.u32 %v839, 2147483648
    %v841 = vmul.f32 %v840, 1.442695
    %v842 = vpow.pop %v841
    %v843 = vadd.f32 %v842, 1.0
    %v844 = vrcp.pop %v843
    %v845 = vmul.f32 %v843, %v844
    %v846 = vsub.f32 1.0, %v845
    %v847 = vmul.f32 %v844, %v846
    %v848 = vadd.f32 %v844, %v847
    %vm849 = vweird.f32 %v843
    %vm850 = vweird.f32 %v844
    %vm851 = vmor %vm849, %vm850
    %v852 = vsel %vm851, %v844, %v848
    %v853 = vand.u32 2147483647, %v843
    %vm854 = vcmp.eq.f32.partialorder %v853, 8.507059e+37
    %v855 = vand.u32 %v843, 2147483648
    %v856 = vor.u32 1.1754944e-38, %v855
    %v857 = vsel %vm854, %v856, %v852
    %v858 = vmul.f32 1.0, %v857
    %v860 = vrot.slane %v820, 6
    %v862 = vadd.f32 %v517, %v860
    %v863 = vxor.u32 %v862, 2147483648
    %v864 = vmul.f32 %v863, 1.442695
    %v865 = vpow.pop %v864
    %v866 = vadd.f32 %v865, 1.0
    %v867 = vrcp.pop %v866
    %v868 = vmul.f32 %v866, %v867
    %v869 = vsub.f32 1.0, %v868
    %v870 = vmul.f32 %v867, %v869
    %v871 = vadd.f32 %v867, %v870
    %vm872 = vweird.f32 %v866
    %vm873 = vweird.f32 %v867
    %vm874 = vmor %vm872, %vm873
    %v875 = vsel %vm874, %v867, %v871
    %v876 = vand.u32 2147483647, %v866
    %vm877 = vcmp.eq.f32.partialorder %v876, 8.507059e+37
    %v878 = vand.u32 %v866, 2147483648
    %v879 = vor.u32 1.1754944e-38, %v878
    %v880 = vsel %vm877, %v879, %v875
    %v881 = vmul.f32 1.0, %v880
    %v882 = vadd.f32 %v833, %v786
    %v884 = vrot.slane %v882, 6
    %v886 = vmul.f32 %v858, %v884
    %v887 = vadd.f32 %v540, %v886
    %v888 = vtanh.pop %v887
    %v889 = vsub.f32 1.0, %v881
    %v890 = vmul.f32 %v889, %v888
    %v892 = vrot.slane %v795, 6
    %v894 = vmul.f32 %v881, %v892
    %v895 = vadd.f32 %v890, %v894
    %v896 = vpack.c.bf16 %v895, %v895
    %v898 = vrot.slane %v896, 1
    %900 = vmatpush.bf16.msra.mxu0 %v679
    %901 = vmatpush.bf16.msra.mxu0 %v676
    %902 = vmatpush.bf16.msra.mxu0 %v673
    %903 = vmatpush.bf16.msra.mxu0 %v670
    %904 = vmatpush.bf16.msra.mxu0 %v667
    %905 = vmatpush.bf16.msra.mxu0 %v664
    %906 = vmatpush.bf16.msra.mxu0 %v661
    %907 = vmatpush.bf16.msra.mxu0 %v658
    %908 = vmatmul.bf16.gmra.mxu0 %v898
    %v909 = vpop.f32.mrf.mxu0
    %v910 = vadd.f32 0.0, %v909
    %v911 = vpop.f32.mrf.mxu0
    %912 = vdwg.mxu0
    %913 = vmatpush.bf16.msra.mxu0 %v680
    %914 = vmatpush.bf16.msra.mxu0 %v677
    %915 = vmatpush.bf16.msra.mxu0 %v674
    %916 = vmatpush.bf16.msra.mxu0 %v671
    %917 = vmatpush.bf16.msra.mxu0 %v668
    %918 = vmatpush.bf16.msra.mxu0 %v665
    %919 = vmatpush.bf16.msra.mxu0 %v662
    %920 = vmatpush.bf16.msra.mxu0 %v659
    %921 = vmatmul.bf16.gmra.mxu0 %v898
    %v922 = vpop.f32.mrf.mxu0
    %v923 = vadd.f32 0.0, %v922
    %v924 = vpop.f32.mrf.mxu0
    %925 = vdwg.mxu0
    %926 = vmatpush.bf16.msra.mxu0 %v681
    %927 = vmatpush.bf16.msra.mxu0 %v678
    %928 = vmatpush.bf16.msra.mxu0 %v675
    %929 = vmatpush.bf16.msra.mxu0 %v672
    %930 = vmatpush.bf16.msra.mxu0 %v669
    %931 = vmatpush.bf16.msra.mxu0 %v666
    %932 = vmatpush.bf16.msra.mxu0 %v663
    %933 = vmatpush.bf16.msra.mxu0 %v660
    %934 = vmatmul.bf16.gmra.mxu0 %v898
    %v935 = vpop.f32.mrf.mxu0
    %v936 = vadd.f32 0.0, %v935
    %v937 = vpop.f32.mrf.mxu0
    %938 = vdwg.mxu0
    %v940 = vrot.slane %v910, 4
    %v942 = vadd.f32 %v494, %v940
    %v943 = vxor.u32 %v942, 2147483648
    %v944 = vmul.f32 %v943, 1.442695
    %v945 = vpow.pop %v944
    %v946 = vadd.f32 %v945, 1.0
    %v947 = vrcp.pop %v946
    %v948 = vmul.f32 %v946, %v947
    %v949 = vsub.f32 1.0, %v948
    %v950 = vmul.f32 %v947, %v949
    %v951 = vadd.f32 %v947, %v950
    %vm952 = vweird.f32 %v946
    %vm953 = vweird.f32 %v947
    %vm954 = vmor %vm952, %vm953
    %v955 = vsel %vm954, %v947, %v951
    %v956 = vand.u32 2147483647, %v946
    %vm957 = vcmp.eq.f32.partialorder %v956, 8.507059e+37
    %v958 = vand.u32 %v946, 2147483648
    %v959 = vor.u32 1.1754944e-38, %v958
    %v960 = vsel %vm957, %v959, %v955
    %v961 = vmul.f32 1.0, %v960
    %v963 = vrot.slane %v923, 4
    %v965 = vadd.f32 %v517, %v963
    %v966 = vxor.u32 %v965, 2147483648
    %v967 = vmul.f32 %v966, 1.442695
    %v968 = vpow.pop %v967
    %v969 = vadd.f32 %v968, 1.0
    %v970 = vrcp.pop %v969
    %v971 = vmul.f32 %v969, %v970
    %v972 = vsub.f32 1.0, %v971
    %v973 = vmul.f32 %v970, %v972
    %v974 = vadd.f32 %v970, %v973
    %vm975 = vweird.f32 %v969
    %vm976 = vweird.f32 %v970
    %vm977 = vmor %vm975, %vm976
    %v978 = vsel %vm977, %v970, %v974
    %v979 = vand.u32 2147483647, %v969
    %vm980 = vcmp.eq.f32.partialorder %v979, 8.507059e+37
    %v981 = vand.u32 %v969, 2147483648
    %v982 = vor.u32 1.1754944e-38, %v981
    %v983 = vsel %vm980, %v982, %v978
    %v984 = vmul.f32 1.0, %v983
    %v985 = vadd.f32 %v936, %v786
    %v987 = vrot.slane %v985, 4
    %v989 = vmul.f32 %v961, %v987
    %v990 = vadd.f32 %v540, %v989
    %v991 = vtanh.pop %v990
    %v992 = vsub.f32 1.0, %v984
    %v993 = vmul.f32 %v992, %v991
    %v995 = vrot.slane %v895, 6
    %v997 = vmul.f32 %v984, %v995
    %v998 = vadd.f32 %v993, %v997
    %v999 = vpack.c.bf16 %v998, %v998
    %v1001 = vrot.slane %v999, 2
    %1003 = vmatpush.bf16.msra.mxu0 %v679
    %1004 = vmatpush.bf16.msra.mxu0 %v676
    %1005 = vmatpush.bf16.msra.mxu0 %v673
    %1006 = vmatpush.bf16.msra.mxu0 %v670
    %1007 = vmatpush.bf16.msra.mxu0 %v667
    %1008 = vmatpush.bf16.msra.mxu0 %v664
    %1009 = vmatpush.bf16.msra.mxu0 %v661
    %1010 = vmatpush.bf16.msra.mxu0 %v658
    %1011 = vmatmul.bf16.gmra.mxu0 %v1001
    %v1012 = vpop.f32.mrf.mxu0
    %v1013 = vadd.f32 0.0, %v1012
    %v1014 = vpop.f32.mrf.mxu0
    %1015 = vdwg.mxu0
    %1016 = vmatpush.bf16.msra.mxu0 %v680
    %1017 = vmatpush.bf16.msra.mxu0 %v677
    %1018 = vmatpush.bf16.msra.mxu0 %v674
    %1019 = vmatpush.bf16.msra.mxu0 %v671
    %1020 = vmatpush.bf16.msra.mxu0 %v668
    %1021 = vmatpush.bf16.msra.mxu0 %v665
    %1022 = vmatpush.bf16.msra.mxu0 %v662
    %1023 = vmatpush.bf16.msra.mxu0 %v659
    %1024 = vmatmul.bf16.gmra.mxu0 %v1001
    %v1025 = vpop.f32.mrf.mxu0
    %v1026 = vadd.f32 0.0, %v1025
    %v1027 = vpop.f32.mrf.mxu0
    %1028 = vdwg.mxu0
    %1029 = vmatpush.bf16.msra.mxu0 %v681
    %1030 = vmatpush.bf16.msra.mxu0 %v678
    %1031 = vmatpush.bf16.msra.mxu0 %v675
    %1032 = vmatpush.bf16.msra.mxu0 %v672
    %1033 = vmatpush.bf16.msra.mxu0 %v669
    %1034 = vmatpush.bf16.msra.mxu0 %v666
    %1035 = vmatpush.bf16.msra.mxu0 %v663
    %1036 = vmatpush.bf16.msra.mxu0 %v660
    %1037 = vmatmul.bf16.gmra.mxu0 %v1001
    %v1038 = vpop.f32.mrf.mxu0
    %v1039 = vadd.f32 0.0, %v1038
    %v1040 = vpop.f32.mrf.mxu0
    %1041 = vdwg.mxu0
    %v1043 = vrot.slane %v1013, 2
    %v1045 = vadd.f32 %v494, %v1043
    %v1046 = vxor.u32 %v1045, 2147483648
    %v1047 = vmul.f32 %v1046, 1.442695
    %v1048 = vpow.pop %v1047
    %v1049 = vadd.f32 %v1048, 1.0
    %v1050 = vrcp.pop %v1049
    %v1051 = vmul.f32 %v1049, %v1050
    %v1052 = vsub.f32 1.0, %v1051
    %v1053 = vmul.f32 %v1050, %v1052
    %v1054 = vadd.f32 %v1050, %v1053
    %vm1055 = vweird.f32 %v1049
    %vm1056 = vweird.f32 %v1050
    %vm1057 = vmor %vm1055, %vm1056
    %v1058 = vsel %vm1057, %v1050, %v1054
    %v1059 = vand.u32 2147483647, %v1049
    %vm1060 = vcmp.eq.f32.partialorder %v1059, 8.507059e+37
    %v1061 = vand.u32 %v1049, 2147483648
    %v1062 = vor.u32 1.1754944e-38, %v1061
    %v1063 = vsel %vm1060, %v1062, %v1058
    %v1064 = vmul.f32 1.0, %v1063
    %v1066 = vrot.slane %v1026, 2
    %v1068 = vadd.f32 %v517, %v1066
    %v1069 = vxor.u32 %v1068, 2147483648
    %v1070 = vmul.f32 %v1069, 1.442695
    %v1071 = vpow.pop %v1070
    %v1072 = vadd.f32 %v1071, 1.0
    %v1073 = vrcp.pop %v1072
    %v1074 = vmul.f32 %v1072, %v1073
    %v1075 = vsub.f32 1.0, %v1074
    %v1076 = vmul.f32 %v1073, %v1075
    %v1077 = vadd.f32 %v1073, %v1076
    %vm1078 = vweird.f32 %v1072
    %vm1079 = vweird.f32 %v1073
    %vm1080 = vmor %vm1078, %vm1079
    %v1081 = vsel %vm1080, %v1073, %v1077
    %v1082 = vand.u32 2147483647, %v1072
    %vm1083 = vcmp.eq.f32.partialorder %v1082, 8.507059e+37
    %v1084 = vand.u32 %v1072, 2147483648
    %v1085 = vor.u32 1.1754944e-38, %v1084
    %v1086 = vsel %vm1083, %v1085, %v1081
    %v1087 = vmul.f32 1.0, %v1086
    %v1088 = vadd.f32 %v1039, %v786
    %v1090 = vrot.slane %v1088, 2
    %v1092 = vmul.f32 %v1064, %v1090
    %v1093 = vadd.f32 %v540, %v1092
    %v1094 = vtanh.pop %v1093
    %v1095 = vsub.f32 1.0, %v1087
    %v1096 = vmul.f32 %v1095, %v1094
    %v1098 = vrot.slane %v998, 6
    %v1100 = vmul.f32 %v1087, %v1098
    %v1101 = vadd.f32 %v1096, %v1100
    %v1102 = vpack.c.bf16 %v1101, %v1101
    %v1104 = vrot.slane %v1102, 3
    %1106 = vmatpush.bf16.msra.mxu0 %v679
    %1107 = vmatpush.bf16.msra.mxu0 %v676
    %1108 = vmatpush.bf16.msra.mxu0 %v673
    %1109 = vmatpush.bf16.msra.mxu0 %v670
    %1110 = vmatpush.bf16.msra.mxu0 %v667
    %1111 = vmatpush.bf16.msra.mxu0 %v664
    %1112 = vmatpush.bf16.msra.mxu0 %v661
    %1113 = vmatpush.bf16.msra.mxu0 %v658
    %1114 = vmatmul.bf16.gmra.mxu0 %v1104
    %v1115 = vpop.f32.mrf.mxu0
    %v1116 = vadd.f32 0.0, %v1115
    %v1117 = vpop.f32.mrf.mxu0
    %1118 = vdwg.mxu0
    %1119 = vmatpush.bf16.msra.mxu0 %v680
    %1120 = vmatpush.bf16.msra.mxu0 %v677
    %1121 = vmatpush.bf16.msra.mxu0 %v674
    %1122 = vmatpush.bf16.msra.mxu0 %v671
    %1123 = vmatpush.bf16.msra.mxu0 %v668
    %1124 = vmatpush.bf16.msra.mxu0 %v665
    %1125 = vmatpush.bf16.msra.mxu0 %v662
    %1126 = vmatpush.bf16.msra.mxu0 %v659
    %1127 = vmatmul.bf16.gmra.mxu0 %v1104
    %v1128 = vpop.f32.mrf.mxu0
    %v1129 = vadd.f32 0.0, %v1128
    %v1130 = vpop.f32.mrf.mxu0
    %1131 = vdwg.mxu0
    %1132 = vmatpush.bf16.msra.mxu0 %v681
    %1133 = vmatpush.bf16.msra.mxu0 %v678
    %1134 = vmatpush.bf16.msra.mxu0 %v675
    %1135 = vmatpush.bf16.msra.mxu0 %v672
    %1136 = vmatpush.bf16.msra.mxu0 %v669
    %1137 = vmatpush.bf16.msra.mxu0 %v666
    %1138 = vmatpush.bf16.msra.mxu0 %v663
    %1139 = vmatpush.bf16.msra.mxu0 %v660
    %1140 = vmatmul.bf16.gmra.mxu0 %v1104
    %v1141 = vpop.f32.mrf.mxu0
    %v1142 = vadd.f32 0.0, %v1141
    %v1143 = vpop.f32.mrf.mxu0
    %1144 = vdwg.mxu0
    %v1145 = vadd.f32 %v497, %v1116
    %v1146 = vxor.u32 %v1145, 2147483648
    %v1147 = vmul.f32 %v1146, 1.442695
    %v1148 = vpow.pop %v1147
    %v1149 = vadd.f32 %v1148, 1.0
    %v1150 = vrcp.pop %v1149
    %v1151 = vmul.f32 %v1149, %v1150
    %v1152 = vsub.f32 1.0, %v1151
    %v1153 = vmul.f32 %v1150, %v1152
    %v1154 = vadd.f32 %v1150, %v1153
    %vm1155 = vweird.f32 %v1149
    %vm1156 = vweird.f32 %v1150
    %vm1157 = vmor %vm1155, %vm1156
    %v1158 = vsel %vm1157, %v1150, %v1154
    %v1159 = vand.u32 2147483647, %v1149
    %vm1160 = vcmp.eq.f32.partialorder %v1159, 8.507059e+37
    %v1161 = vand.u32 %v1149, 2147483648
    %v1162 = vor.u32 1.1754944e-38, %v1161
    %v1163 = vsel %vm1160, %v1162, %v1158
    %v1164 = vmul.f32 1.0, %v1163
    %v1165 = vadd.f32 %v520, %v1129
    %v1166 = vxor.u32 %v1165, 2147483648
    %v1167 = vmul.f32 %v1166, 1.442695
    %v1168 = vpow.pop %v1167
    %v1169 = vadd.f32 %v1168, 1.0
    %v1170 = vrcp.pop %v1169
    %v1171 = vmul.f32 %v1169, %v1170
    %v1172 = vsub.f32 1.0, %v1171
    %v1173 = vmul.f32 %v1170, %v1172
    %v1174 = vadd.f32 %v1170, %v1173
    %vm1175 = vweird.f32 %v1169
    %vm1176 = vweird.f32 %v1170
    %vm1177 = vmor %vm1175, %vm1176
    %v1178 = vsel %vm1177, %v1170, %v1174
    %v1179 = vand.u32 2147483647, %v1169
    %vm1180 = vcmp.eq.f32.partialorder %v1179, 8.507059e+37
    %v1181 = vand.u32 %v1169, 2147483648
    %v1182 = vor.u32 1.1754944e-38, %v1181
    %v1183 = vsel %vm1180, %v1182, %v1178
    %v1184 = vmul.f32 1.0, %v1183
    %v1185 = vadd.f32 %v1142, %v786
    %v1186 = vmul.f32 %v1164, %v1185
    %v1187 = vadd.f32 %v543, %v1186
    %v1188 = vtanh.pop %v1187
    %v1189 = vsub.f32 1.0, %v1184
    %v1190 = vmul.f32 %v1189, %v1188
    %v1192 = vrot.slane %v1101, 6
    %v1194 = vmul.f32 %v1184, %v1192
    %v1195 = vadd.f32 %v1190, %v1194
    %v1196 = vpack.c.bf16 %v1195, %v1195
    %1197 = vmatpush.bf16.msra.mxu0 %v679
    %1198 = vmatpush.bf16.msra.mxu0 %v676
    %1199 = vmatpush.bf16.msra.mxu0 %v673
    %1200 = vmatpush.bf16.msra.mxu0 %v670
    %1201 = vmatpush.bf16.msra.mxu0 %v667
    %1202 = vmatpush.bf16.msra.mxu0 %v664
    %1203 = vmatpush.bf16.msra.mxu0 %v661
    %1204 = vmatpush.bf16.msra.mxu0 %v658
    %1205 = vmatmul.bf16.gmra.mxu0 %v1196
    %v1206 = vpop.f32.mrf.mxu0
    %v1207 = vadd.f32 0.0, %v1206
    %v1208 = vpop.f32.mrf.mxu0
    %1209 = vdwg.mxu0
    %1210 = vmatpush.bf16.msra.mxu0 %v680
    %1211 = vmatpush.bf16.msra.mxu0 %v677
    %1212 = vmatpush.bf16.msra.mxu0 %v674
    %1213 = vmatpush.bf16.msra.mxu0 %v671
    %1214 = vmatpush.bf16.msra.mxu0 %v668
    %1215 = vmatpush.bf16.msra.mxu0 %v665
    %1216 = vmatpush.bf16.msra.mxu0 %v662
    %1217 = vmatpush.bf16.msra.mxu0 %v659
    %1218 = vmatmul.bf16.gmra.mxu0 %v1196
    %v1219 = vpop.f32.mrf.mxu0
    %v1220 = vadd.f32 0.0, %v1219
    %v1221 = vpop.f32.mrf.mxu0
    %1222 = vdwg.mxu0
    %1223 = vmatpush.bf16.msra.mxu0 %v681
    %1224 = vmatpush.bf16.msra.mxu0 %v678
    %1225 = vmatpush.bf16.msra.mxu0 %v675
    %1226 = vmatpush.bf16.msra.mxu0 %v672
    %1227 = vmatpush.bf16.msra.mxu0 %v669
    %1228 = vmatpush.bf16.msra.mxu0 %v666
    %1229 = vmatpush.bf16.msra.mxu0 %v663
    %1230 = vmatpush.bf16.msra.mxu0 %v660
    %1231 = vmatmul.bf16.gmra.mxu0 %v1196
    %v1232 = vpop.f32.mrf.mxu0
    %v1233 = vadd.f32 0.0, %v1232
    %v1234 = vpop.f32.mrf.mxu0
    %1235 = vdwg.mxu0
    %v1237 = vrot.slane %v1207, 6
    %v1239 = vadd.f32 %v497, %v1237
    %v1240 = vxor.u32 %v1239, 2147483648
    %v1241 = vmul.f32 %v1240, 1.442695
    %v1242 = vpow.pop %v1241
    %v1243 = vadd.f32 %v1242, 1.0
    %v1244 = vrcp.pop %v1243
    %v1245 = vmul.f32 %v1243, %v1244
    %v1246 = vsub.f32 1.0, %v1245
    %v1247 = vmul.f32 %v1244, %v1246
    %v1248 = vadd.f32 %v1244, %v1247
    %vm1249 = vweird.f32 %v1243
    %vm1250 = vweird.f32 %v1244
    %vm1251 = vmor %vm1249, %vm1250
    %v1252 = vsel %vm1251, %v1244, %v1248
    %v1253 = vand.u32 2147483647, %v1243
    %vm1254 = vcmp.eq.f32.partialorder %v1253, 8.507059e+37
    %v1255 = vand.u32 %v1243, 2147483648
    %v1256 = vor.u32 1.1754944e-38, %v1255
    %v1257 = vsel %vm1254, %v1256, %v1252
    %v1258 = vmul.f32 1.0, %v1257
    %v1260 = vrot.slane %v1220, 6
    %v1262 = vadd.f32 %v520, %v1260
    %v1263 = vxor.u32 %v1262, 2147483648
    %v1264 = vmul.f32 %v1263, 1.442695
    %v1265 = vpow.pop %v1264
    %v1266 = vadd.f32 %v1265, 1.0
    %v1267 = vrcp.pop %v1266
    %v1268 = vmul.f32 %v1266, %v1267
    %v1269 = vsub.f32 1.0, %v1268
    %v1270 = vmul.f32 %v1267, %v1269
    %v1271 = vadd.f32 %v1267, %v1270
    %vm1272 = vweird.f32 %v1266
    %vm1273 = vweird.f32 %v1267
    %vm1274 = vmor %vm1272, %vm1273
    %v1275 = vsel %vm1274, %v1267, %v1271
    %v1276 = vand.u32 2147483647, %v1266
    %vm1277 = vcmp.eq.f32.partialorder %v1276, 8.507059e+37
    %v1278 = vand.u32 %v1266, 2147483648
    %v1279 = vor.u32 1.1754944e-38, %v1278
    %v1280 = vsel %vm1277, %v1279, %v1275
    %v1281 = vmul.f32 1.0, %v1280
    %v1282 = vadd.f32 %v1233, %v786
    %v1284 = vrot.slane %v1282, 6
    %v1286 = vmul.f32 %v1258, %v1284
    %v1287 = vadd.f32 %v543, %v1286
    %v1288 = vtanh.pop %v1287
    %v1289 = vsub.f32 1.0, %v1281
    %v1290 = vmul.f32 %v1289, %v1288
    %v1292 = vrot.slane %v1195, 6
    %v1294 = vmul.f32 %v1281, %v1292
    %v1295 = vadd.f32 %v1290, %v1294
    %v1296 = vpack.c.bf16 %v1295, %v1295
    %v1298 = vrot.slane %v1296, 1
    %1300 = vmatpush.bf16.msra.mxu0 %v679
    %1301 = vmatpush.bf16.msra.mxu0 %v676
    %1302 = vmatpush.bf16.msra.mxu0 %v673
    %1303 = vmatpush.bf16.msra.mxu0 %v670
    %1304 = vmatpush.bf16.msra.mxu0 %v667
    %1305 = vmatpush.bf16.msra.mxu0 %v664
    %1306 = vmatpush.bf16.msra.mxu0 %v661
    %1307 = vmatpush.bf16.msra.mxu0 %v658
    %1308 = vmatmul.bf16.gmra.mxu0 %v1298
    %v1309 = vpop.f32.mrf.mxu0
    %v1310 = vadd.f32 0.0, %v1309
    %v1311 = vpop.f32.mrf.mxu0
    %1312 = vdwg.mxu0
    %1313 = vmatpush.bf16.msra.mxu0 %v680
    %1314 = vmatpush.bf16.msra.mxu0 %v677
    %1315 = vmatpush.bf16.msra.mxu0 %v674
    %1316 = vmatpush.bf16.msra.mxu0 %v671
    %1317 = vmatpush.bf16.msra.mxu0 %v668
    %1318 = vmatpush.bf16.msra.mxu0 %v665
    %1319 = vmatpush.bf16.msra.mxu0 %v662
    %1320 = vmatpush.bf16.msra.mxu0 %v659
    %1321 = vmatmul.bf16.gmra.mxu0 %v1298
    %v1322 = vpop.f32.mrf.mxu0
    %v1323 = vadd.f32 0.0, %v1322
    %v1324 = vpop.f32.mrf.mxu0
    %1325 = vdwg.mxu0
    %1326 = vmatpush.bf16.msra.mxu0 %v681
    %1327 = vmatpush.bf16.msra.mxu0 %v678
    %1328 = vmatpush.bf16.msra.mxu0 %v675
    %1329 = vmatpush.bf16.msra.mxu0 %v672
    %1330 = vmatpush.bf16.msra.mxu0 %v669
    %1331 = vmatpush.bf16.msra.mxu0 %v666
    %1332 = vmatpush.bf16.msra.mxu0 %v663
    %1333 = vmatpush.bf16.msra.mxu0 %v660
    %1334 = vmatmul.bf16.gmra.mxu0 %v1298
    %v1335 = vpop.f32.mrf.mxu0
    %v1336 = vadd.f32 0.0, %v1335
    %v1337 = vpop.f32.mrf.mxu0
    %1338 = vdwg.mxu0
    %v1340 = vrot.slane %v1310, 4
    %v1342 = vadd.f32 %v497, %v1340
    %v1343 = vxor.u32 %v1342, 2147483648
    %v1344 = vmul.f32 %v1343, 1.442695
    %v1345 = vpow.pop %v1344
    %v1346 = vadd.f32 %v1345, 1.0
    %v1347 = vrcp.pop %v1346
    %v1348 = vmul.f32 %v1346, %v1347
    %v1349 = vsub.f32 1.0, %v1348
    %v1350 = vmul.f32 %v1347, %v1349
    %v1351 = vadd.f32 %v1347, %v1350
    %vm1352 = vweird.f32 %v1346
    %vm1353 = vweird.f32 %v1347
    %vm1354 = vmor %vm1352, %vm1353
    %v1355 = vsel %vm1354, %v1347, %v1351
    %v1356 = vand.u32 2147483647, %v1346
    %vm1357 = vcmp.eq.f32.partialorder %v1356, 8.507059e+37
    %v1358 = vand.u32 %v1346, 2147483648
    %v1359 = vor.u32 1.1754944e-38, %v1358
    %v1360 = vsel %vm1357, %v1359, %v1355
    %v1361 = vmul.f32 1.0, %v1360
    %v1363 = vrot.slane %v1323, 4
    %v1365 = vadd.f32 %v520, %v1363
    %v1366 = vxor.u32 %v1365, 2147483648
    %v1367 = vmul.f32 %v1366, 1.442695
    %v1368 = vpow.pop %v1367
    %v1369 = vadd.f32 %v1368, 1.0
    %v1370 = vrcp.pop %v1369
    %v1371 = vmul.f32 %v1369, %v1370
    %v1372 = vsub.f32 1.0, %v1371
    %v1373 = vmul.f32 %v1370, %v1372
    %v1374 = vadd.f32 %v1370, %v1373
    %vm1375 = vweird.f32 %v1369
    %vm1376 = vweird.f32 %v1370
    %vm1377 = vmor %vm1375, %vm1376
    %v1378 = vsel %vm1377, %v1370, %v1374
    %v1379 = vand.u32 2147483647, %v1369
    %vm1380 = vcmp.eq.f32.partialorder %v1379, 8.507059e+37
    %v1381 = vand.u32 %v1369, 2147483648
    %v1382 = vor.u32 1.1754944e-38, %v1381
    %v1383 = vsel %vm1380, %v1382, %v1378
    %v1384 = vmul.f32 1.0, %v1383
    %v1385 = vadd.f32 %v1336, %v786
    %v1387 = vrot.slane %v1385, 4
    %v1389 = vmul.f32 %v1361, %v1387
    %v1390 = vadd.f32 %v543, %v1389
    %v1391 = vtanh.pop %v1390
    %v1392 = vsub.f32 1.0, %v1384
    %v1393 = vmul.f32 %v1392, %v1391
    %v1395 = vrot.slane %v1295, 6
    %v1397 = vmul.f32 %v1384, %v1395
    %v1398 = vadd.f32 %v1393, %v1397
    %v1399 = vpack.c.bf16 %v1398, %v1398
    %v1401 = vrot.slane %v1399, 2
    %1403 = vmatpush.bf16.msra.mxu0 %v679
    %1404 = vmatpush.bf16.msra.mxu0 %v676
    %1405 = vmatpush.bf16.msra.mxu0 %v673
    %1406 = vmatpush.bf16.msra.mxu0 %v670
    %1407 = vmatpush.bf16.msra.mxu0 %v667
    %1408 = vmatpush.bf16.msra.mxu0 %v664
    %1409 = vmatpush.bf16.msra.mxu0 %v661
    %1410 = vmatpush.bf16.msra.mxu0 %v658
    %1411 = vmatmul.bf16.gmra.mxu0 %v1401
    %v1412 = vpop.f32.mrf.mxu0
    %v1413 = vadd.f32 0.0, %v1412
    %v1414 = vpop.f32.mrf.mxu0
    %1415 = vdwg.mxu0
    %1416 = vmatpush.bf16.msra.mxu0 %v680
    %1417 = vmatpush.bf16.msra.mxu0 %v677
    %1418 = vmatpush.bf16.msra.mxu0 %v674
    %1419 = vmatpush.bf16.msra.mxu0 %v671
    %1420 = vmatpush.bf16.msra.mxu0 %v668
    %1421 = vmatpush.bf16.msra.mxu0 %v665
    %1422 = vmatpush.bf16.msra.mxu0 %v662
    %1423 = vmatpush.bf16.msra.mxu0 %v659
    %1424 = vmatmul.bf16.gmra.mxu0 %v1401
    %v1425 = vpop.f32.mrf.mxu0
    %v1426 = vadd.f32 0.0, %v1425
    %v1427 = vpop.f32.mrf.mxu0
    %1428 = vdwg.mxu0
    %1429 = vmatpush.bf16.msra.mxu0 %v681
    %1430 = vmatpush.bf16.msra.mxu0 %v678
    %1431 = vmatpush.bf16.msra.mxu0 %v675
    %1432 = vmatpush.bf16.msra.mxu0 %v672
    %1433 = vmatpush.bf16.msra.mxu0 %v669
    %1434 = vmatpush.bf16.msra.mxu0 %v666
    %1435 = vmatpush.bf16.msra.mxu0 %v663
    %1436 = vmatpush.bf16.msra.mxu0 %v660
    %1437 = vmatmul.bf16.gmra.mxu0 %v1401
    %v1438 = vpop.f32.mrf.mxu0
    %v1439 = vadd.f32 0.0, %v1438
    %v1440 = vpop.f32.mrf.mxu0
    %1441 = vdwg.mxu0
    %v1443 = vrot.slane %v1413, 2
    %v1445 = vadd.f32 %v497, %v1443
    %v1446 = vxor.u32 %v1445, 2147483648
    %v1447 = vmul.f32 %v1446, 1.442695
    %v1448 = vpow.pop %v1447
    %v1449 = vadd.f32 %v1448, 1.0
    %v1450 = vrcp.pop %v1449
    %v1451 = vmul.f32 %v1449, %v1450
    %v1452 = vsub.f32 1.0, %v1451
    %v1453 = vmul.f32 %v1450, %v1452
    %v1454 = vadd.f32 %v1450, %v1453
    %vm1455 = vweird.f32 %v1449
    %vm1456 = vweird.f32 %v1450
    %vm1457 = vmor %vm1455, %vm1456
    %v1458 = vsel %vm1457, %v1450, %v1454
    %v1459 = vand.u32 2147483647, %v1449
    %vm1460 = vcmp.eq.f32.partialorder %v1459, 8.507059e+37
    %v1461 = vand.u32 %v1449, 2147483648
    %v1462 = vor.u32 1.1754944e-38, %v1461
    %v1463 = vsel %vm1460, %v1462, %v1458
    %v1464 = vmul.f32 1.0, %v1463
    %v1466 = vrot.slane %v1426, 2
    %v1468 = vadd.f32 %v520, %v1466
    %v1469 = vxor.u32 %v1468, 2147483648
    %v1470 = vmul.f32 %v1469, 1.442695
    %v1471 = vpow.pop %v1470
    %v1472 = vadd.f32 %v1471, 1.0
    %v1473 = vrcp.pop %v1472
    %v1474 = vmul.f32 %v1472, %v1473
    %v1475 = vsub.f32 1.0, %v1474
    %v1476 = vmul.f32 %v1473, %v1475
    %v1477 = vadd.f32 %v1473, %v1476
    %vm1478 = vweird.f32 %v1472
    %vm1479 = vweird.f32 %v1473
    %vm1480 = vmor %vm1478, %vm1479
    %v1481 = vsel %vm1480, %v1473, %v1477
    %v1482 = vand.u32 2147483647, %v1472
    %vm1483 = vcmp.eq.f32.partialorder %v1482, 8.507059e+37
    %v1484 = vand.u32 %v1472, 2147483648
    %v1485 = vor.u32 1.1754944e-38, %v1484
    %v1486 = vsel %vm1483, %v1485, %v1481
    %v1487 = vmul.f32 1.0, %v1486
    %v1488 = vadd.f32 %v1439, %v786
    %v1490 = vrot.slane %v1488, 2
    %v1492 = vmul.f32 %v1464, %v1490
    %v1493 = vadd.f32 %v543, %v1492
    %v1494 = vtanh.pop %v1493
    %v1495 = vsub.f32 1.0, %v1487
    %v1496 = vmul.f32 %v1495, %v1494
    %v1498 = vrot.slane %v1398, 6
    %v1500 = vmul.f32 %v1487, %v1498
    %v1501 = vadd.f32 %v1496, %v1500
    %v1502 = vld [vmem:[%s8] sm:$0xff]
    %v1503 = vld [vmem:[%s8 + $0x8] sm:$0xff]
    %v1504 = vld [vmem:[%s8 + $0x10] sm:$0xff]
    %v1505 = vld [vmem:[%s8 + $0x18] sm:$0xff]
    %v1506 = vld [vmem:[%s8 + $0x20] sm:$0xff]
    %v1507 = vld [vmem:[%s8 + $0x28] sm:$0xff]
    %v1508 = vld [vmem:[%s8 + $0x30] sm:$0xff]
    %v1509 = vld [vmem:[%s8 + $0x38] sm:$0xff]
    %v1510 = vld [vmem:[%s8 + $0x40] sm:$0xff]
    %v1511 = vld [vmem:[%s8 + $0x48] sm:$0xff]
    %v1512 = vld [vmem:[%s8 + $0x50] sm:$0xff]
    %v1513 = vld [vmem:[%s8 + $0x58] sm:$0xff]
    %v1514 = vld [vmem:[%s8 + $0x60] sm:$0xff]
    %v1515 = vld [vmem:[%s8 + $0x68] sm:$0xff]
    %v1516 = vld [vmem:[%s8 + $0x70] sm:$0xff]
    %v1517 = vld [vmem:[%s8 + $0x78] sm:$0xff]
    %v1518 = vld [vmem:[%s9] sm:$0x1]
    %v1520 = vperm.slane %v1518, 0
    %v1523 = vrot.slane %v1501, 6
    %1525 = vmatpush.msra.mxu0 %v1517
    %1526 = vmatpush.msra.mxu0 %v1516
    %1527 = vmatpush.msra.mxu0 %v1515
    %1528 = vmatpush.msra.mxu0 %v1514
    %1529 = vmatpush.msra.mxu0 %v1513
    %1530 = vmatpush.msra.mxu0 %v1512
    %1531 = vmatpush.msra.mxu0 %v1511
    %1532 = vmatpush.msra.mxu0 %v1510
    %1533 = vmatpush.msra.mxu0 %v1509
    %1534 = vmatpush.msra.mxu0 %v1508
    %1535 = vmatpush.msra.mxu0 %v1507
    %1536 = vmatpush.msra.mxu0 %v1506
    %1537 = vmatpush.msra.mxu0 %v1505
    %1538 = vmatpush.msra.mxu0 %v1504
    %1539 = vmatpush.msra.mxu0 %v1503
    %1540 = vmatpush.msra.mxu0 %v1502
    %1541 = vmatmul.f32.gmra.mxu0 %v1523
    %v1542 = vpop.f32.mrf.mxu0
    %v1543 = vadd.f32 %v1520, %v1542
    %1544 = vdwg.mxu0
    %vm1545 = vcmask 9216
    %1546 = vst.msk [vmem:[#allocation10] sm:$0x3] %vm1545, %v1543
    // Predicated region
    $region54: #{text_dsm_forward.1} parent=1 // pred_check
      _
    $region55: #{text_dsm_forward.1} parent=1 // pred_check_branch
      %1548 = sbr.rel (0) target = $region57
    $region56: #{text_dsm_forward.1} parent=1 // pred_region
      %1550 = vsyncadd [#allocation5], 0
      %s1552 = sshll.u32 [#allocation10], 4
      %s1553 = int_to_ptr.vmem [resolvable:$true] %s1552
      %s1554 = sshll.u32 %s10, 4
      %s1555 = int_to_ptr.hbm [resolvable:$true] %s1554
      %1557 = dma.vmem_to_hbm [thread:$0]  %s1553, 32, %s1555, [#allocation5]
    $region57: #{text_dsm_forward.1} parent=1 // pred_fallthru
      _
    // Predicated region
    $region58: #{text_dsm_forward.1} parent=1 // pred_check
      _
    $region59: #{text_dsm_forward.1} parent=1 // pred_check_branch
      %1559 = sbr.rel (0) target = $region61
    $region60: #{text_dsm_forward.1} parent=1 // pred_region
      %1561 = dma.done [#allocation5], 32
    $region61: #{text_dsm_forward.1} parent=1 // pred_fallthru
      _
    %1562 = vsyncpa [#allocation4], 1
    %1563 = vsyncpa [#allocation5], 1
    %1564 = vsyncpa [#allocation6], 1
    %1565 = vsyncpa [#allocation8], 1

</llo_original>
